<compile_context>
chip_gen: v6e
topology: v6e:2x2x1
jax: 0.10.0
libtpu: 0.0.40
codegen_flags: <defaults>
</compile_context>

<pallas_src>
import functools

import jax
import jax.numpy as jnp
from jax.experimental import pallas as pl
from jax.experimental.pallas import tpu as pltpu

LN_EPS = 1e-5  # PyTorch nn.LayerNorm default


# --------------------------------------------------------------------------- #
# Kernel
# --------------------------------------------------------------------------- #
def _grn_kernel(x_ref, w0f3_ref, b0f3_ref, w1_ref, w2_ref, ln_ref,
                wgf_ref, bgf_ref, o_ref, *, hidden_size, output_size):
    mm_dtype = w0f3_ref.dtype            # f32 or bf16 (weights pre-cast in pack_params)
    x_in = x_ref[...].astype(mm_dtype)   # cast once

    def relu_layernorm(h, gamma, beta):
        h = jnp.maximum(h, 0.0)
        # Two *independent* lane reductions (overlap on the XLUs); stats stay f32.
        mu = jnp.mean(h, axis=-1, keepdims=True)
        ms = jnp.mean(h * h, axis=-1, keepdims=True)
        var = ms - mu * mu
        scale = gamma * jax.lax.rsqrt(var + LN_EPS)   # fold gamma into the scale
        return (h - mu) * scale + beta

    # ---- fused layer-0 + fc3 skip:  x @ [w0 | wf3] + [b0 | bf3] --------------
    z0 = jnp.dot(x_in, w0f3_ref[...],
                 preferred_element_type=jnp.float32) + b0f3_ref[...]
    skip = z0[:, hidden_size:]                                   # fc3(x_input)
    h = relu_layernorm(z0[:, :hidden_size], ln_ref[0:1, :], ln_ref[1:2, :])

    # ---- layer 1 -------------------------------------------------------------
    h = jnp.dot(h.astype(mm_dtype), w1_ref[...],
                preferred_element_type=jnp.float32) + ln_ref[2:3, :]
    h = relu_layernorm(h, ln_ref[3:4, :], ln_ref[4:5, :])

    # ---- layer 2 -------------------------------------------------------------
    h = jnp.dot(h.astype(mm_dtype), w2_ref[...],
                preferred_element_type=jnp.float32) + ln_ref[5:6, :]
    h = relu_layernorm(h, ln_ref[6:7, :], ln_ref[7:8, :])

    # ---- fused gate | fc2 matmul:  h @ [wg | wf2] ----------------------------
    z = jnp.dot(h.astype(mm_dtype), wgf_ref[...],
                preferred_element_type=jnp.float32) + bgf_ref[...]
    gate = jax.nn.sigmoid(z[:, :output_size])
    x2 = z[:, output_size:]

    o_ref[...] = skip + gate * x2


# --------------------------------------------------------------------------- #
# Parameter packing (do this ONCE, outside the hot path)
# --------------------------------------------------------------------------- #
def pack_params(params, matmul_dtype=jnp.bfloat16):
    """Fuse / pack weights for the kernel. Weights are stored as (in, out).

    bf16 matmul operands are the recommended default on v5e/v6e/v7x (MXU is
    bf16-native on all three); accumulation and LayerNorm stats stay f32.
    Biases/gamma/beta stay f32 (added to f32 accumulators).
    """
    w0f3 = jnp.concatenate([params["w0"], params["wf3"]], axis=1)       # (in, hid+out)
    b0f3 = jnp.concatenate([params["b0"], params["bf3"]], axis=1)       # (1, hid+out)
    # 8 packed per-layer vectors -> one (8, hidden) array (one sublane tile):
    #   [g0, be0, b1, g1, be1, b2, g2, be2]
    ln_vecs = jnp.concatenate(
        [params["g0"], params["be0"],
         params["b1"], params["g1"], params["be1"],
         params["b2"], params["g2"], params["be2"]], axis=0)            # (8, hidden)
    w_gf = jnp.concatenate([params["wg"], params["wf2"]], axis=1)       # (hid, 2*out)
    b_gf = jnp.concatenate([params["bg"], params["bf2"]], axis=1)       # (1, 2*out)

    return {
        "w0f3": w0f3.astype(matmul_dtype),
        "b0f3": b0f3.astype(jnp.float32),
        "w1": params["w1"].astype(matmul_dtype),
        "w2": params["w2"].astype(matmul_dtype),
        "ln": ln_vecs.astype(jnp.float32),
        "w_gf": w_gf.astype(matmul_dtype),
        "b_gf": b_gf.astype(jnp.float32),
        "input_size": int(params["w0"].shape[0]),
        "hidden_size": int(params["w0"].shape[1]),
        "output_size": int(params["wf3"].shape[1]),
    }


def _choose_batch_tile(B, batch_tile):
    """Pick a batch tile (multiple of 8) that:
       * stays <= batch_tile,
       * gives >= 4 grid steps when the batch allows (2 v7x TensorCores x >= 2
         steps each, so intra-core DMA/compute overlap survives megacore sharding),
       * prefers an even step count (balanced core split) with minimal padding.
    """
    cap = max(8, min(batch_tile, pl.cdiv(B, 8) * 8))
    steps = pl.cdiv(B, cap)
    if B >= 4 * 8:
        steps = max(steps, 4)
    if steps > 1 and steps % 2:
        steps += 1                       # best-effort even step count
    bt = pl.cdiv(pl.cdiv(B, steps), 8) * 8   # round UP to 8 -> minimal padding
    return max(8, bt)


# --------------------------------------------------------------------------- #
# Wrapper
# --------------------------------------------------------------------------- #
def gated_residual_network(x, packed, *, batch_tile=256, vmem_limit_bytes=None):
    """x: (B, input_size) float32. packed: output of pack_params()."""
    B, input_size = x.shape
    hidden_size = packed["hidden_size"]
    output_size = packed["output_size"]
    assert input_size == packed["input_size"]

    # ---- batch tiling --------------------------------------------------------
    bt = _choose_batch_tile(B, batch_tile)
    steps = pl.cdiv(B, bt)
    B_pad = steps * bt
    if B_pad != B:
        x = jnp.pad(x, ((0, B_pad - B), (0, 0)))
    grid = (steps,)

    # ---- block specs ---------------------------------------------------------
    # Grid-invariant operands: single-buffered (constant index_map -> never
    # re-fetched, so no point paying 2x VMEM residency for double buffers).
    def const_spec(shape):
        return pl.BlockSpec(shape, lambda i: (0,) * len(shape),
                            pipeline_mode=pl.Buffered(1))

    in_specs = [
        pl.BlockSpec((bt, input_size), lambda i: (i, 0)),            # x (streamed)
        const_spec((input_size, hidden_size + output_size)),         # [w0 | wf3]
        const_spec((1, hidden_size + output_size)),                  # [b0 | bf3]
        const_spec((hidden_size, hidden_size)),                      # w1
        const_spec((hidden_size, hidden_size)),                      # w2
        const_spec((8, hidden_size)),                                # packed LN vectors
        const_spec((hidden_size, 2 * output_size)),                  # [wg | wf2]
        const_spec((1, 2 * output_size)),                            # [bg | bf2]
    ]
    out_spec = pl.BlockSpec((bt, output_size), lambda i: (i, 0))

    # ---- cost estimate (advisory for XLA scheduling) -------------------------
    wt_itemsize = packed["w0f3"].dtype.itemsize
    weight_elems = (packed["w0f3"].size + packed["w1"].size
                    + packed["w2"].size + packed["w_gf"].size)
    bias_bytes = (packed["b0f3"].size + packed["ln"].size + packed["b_gf"].size) * 4
    weight_bytes = weight_elems * wt_itemsize
    flops = 2 * B_pad * (input_size * (hidden_size + output_size)
                         + 2 * hidden_size * hidden_size
                         + hidden_size * 2 * output_size)
    transcendentals = B_pad * (output_size + 3)     # sigmoid row + rsqrt per layer
    bytes_accessed = (x.size * 4 + B_pad * output_size * 4
                      + weight_bytes + bias_bytes)
    cost = pl.CostEstimate(flops=int(flops),
                           transcendentals=int(transcendentals),
                           bytes_accessed=int(bytes_accessed))

    # ---- VMEM budget: derived from the actual footprint ----------------------
    # single-buffered weights + double-buffered x/out tiles + in-kernel temporaries,
    # with 2x headroom and a couple of MiB of slack.  No artificial floor/clamp:
    # an oversize config should fail loudly rather than be silently squeezed.
    if vmem_limit_bytes is None:
        io_bytes = 2 * bt * (input_size + output_size) * 4
        work_bytes = 6 * bt * max(hidden_size + output_size, 2 * output_size) * 4
        vmem_limit_bytes = int(2 * (weight_bytes + bias_bytes + io_bytes + work_bytes)
                               + (4 << 20))

    fn = pl.pallas_call(
        functools.partial(_grn_kernel,
                          hidden_size=hidden_size, output_size=output_size),
        out_shape=jax.ShapeDtypeStruct((B_pad, output_size), jnp.float32),
        grid_spec=pltpu.PrefetchScalarGridSpec(
            num_scalar_prefetch=0,
            grid=grid,
            in_specs=in_specs,
            out_specs=out_spec,
        ),
        compiler_params=pltpu.CompilerParams(
            dimension_semantics=("parallel",),
            vmem_limit_bytes=vmem_limit_bytes,
        ),
        cost_estimate=cost,
    )
    out = fn(x, packed["w0f3"], packed["b0f3"], packed["w1"], packed["w2"],
             packed["ln"], packed["w_gf"], packed["b_gf"])
    return out[:B]


# --------------------------------------------------------------------------- #
# Reference + synthetic init
# --------------------------------------------------------------------------- #
def init_params(key, input_size, hidden_size, output_size, num_layers=3):
    """Deterministic synthetic init. Linear weights stored as (in, out)."""
    ks = iter(jax.random.split(key, 8))

    def lin(kin, kout):
        kw = next(ks)
        bound = 1.0 / jnp.sqrt(kin)
        w = jax.random.uniform(kw, (kin, kout), jnp.float32, -bound, bound)
        b = jax.random.uniform(jax.random.fold_in(kw, 1), (1, kout),
                               jnp.float32, -bound, bound)
        return w, b

    p = {}
    p["w0"], p["b0"] = lin(input_size, hidden_size)
    p["w1"], p["b1"] = lin(hidden_size, hidden_size)
    p["w2"], p["b2"] = lin(hidden_size, hidden_size)
    for i in range(num_layers):
        p[f"g{i}"] = jnp.ones((1, hidden_size), jnp.float32)
        p[f"be{i}"] = jnp.zeros((1, hidden_size), jnp.float32)
    p["wg"], p["bg"] = lin(hidden_size, output_size)
    p["wf2"], p["bf2"] = lin(hidden_size, output_size)
    p["wf3"], p["bf3"] = lin(input_size, output_size)
    return p


def _reference(x, p):
    h = x
    for i in range(3):
        h = jnp.maximum(h @ p[f"w{i}"] + p[f"b{i}"], 0.0)
        mu = jnp.mean(h, axis=-1, keepdims=True)
        var = jnp.mean((h - mu) ** 2, axis=-1, keepdims=True)
        h = (h - mu) / jnp.sqrt(var + LN_EPS) * p[f"g{i}"] + p[f"be{i}"]
    gate = jax.nn.sigmoid(h @ p["wg"] + p["bg"])
    x2 = h @ p["wf2"] + p["bf2"]
    return x @ p["wf3"] + p["bf3"] + gate * x2


if __name__ == "__main__":
    key = jax.random.PRNGKey(0)
    k_x, k_p = jax.random.split(key)

    # Lane-dense feature dims (multiples of 128) and a batch big enough to
    # exercise the >=4-step tiling path while staying a tiny problem overall.
    batch, input_size, hidden_size, output_size = 512, 64, 128, 128
    x = jax.random.normal(k_x, (batch, input_size), jnp.float32)
    params = init_params(k_p, input_size, hidden_size, output_size)

    ref = _reference(x, params)

    # f32 MXU path (tight check).
    packed_f32 = pack_params(params, matmul_dtype=jnp.float32)
    out = jax.block_until_ready(gated_residual_network(x, packed_f32))
    assert out.shape == (batch, output_size)
    assert jnp.allclose(out, ref, atol=2e-4, rtol=2e-4)

    # bf16 MXU path (recommended default on v5e/v6e/v7x): f32 accumulation and
    # f32 LayerNorm stats, loose check.
    packed_bf16 = pack_params(params, matmul_dtype=jnp.bfloat16)
    out_bf16 = jax.block_until_ready(gated_residual_network(x, packed_bf16))
    assert out_bf16.shape == (batch, output_size)
    assert float(jnp.max(jnp.abs(out_bf16 - ref))) < 0.25

    print("KERNEL_OK")
</pallas_src>

<mosaic_0001>
module attributes {stable_mosaic.version = 11 : i64} {
  func.func @_grn_kernel(%arg0: i32, %arg1: memref<128x64xf32, #tpu.memory_space<vmem>>, %arg2: memref<64x256xf32, #tpu.memory_space<vmem>>, %arg3: memref<1x256xf32, #tpu.memory_space<vmem>>, %arg4: memref<128x128xf32, #tpu.memory_space<vmem>>, %arg5: memref<128x128xf32, #tpu.memory_space<vmem>>, %arg6: memref<8x128xf32, #tpu.memory_space<vmem>>, %arg7: memref<128x256xf32, #tpu.memory_space<vmem>>, %arg8: memref<1x256xf32, #tpu.memory_space<vmem>>, %arg9: memref<128x128xf32, #tpu.memory_space<vmem>>) attributes {dimension_semantics = [#tpu.dimension_semantics<parallel>], iteration_bounds = array<i64: 4>, scalar_prefetch = 0 : i64, scratch_operands = 0 : i64, tpu.core_type = #tpu.core_type<tc>, window_params = [{transform_indices = @transform_0, window_bounds = array<i64: 128, 64>}, {pipeline_mode = #tpu.pipeline_mode<synchronous>, transform_indices = @transform_1, window_bounds = array<i64: 64, 256>}, {pipeline_mode = #tpu.pipeline_mode<synchronous>, transform_indices = @transform_2, window_bounds = array<i64: 1, 256>}, {pipeline_mode = #tpu.pipeline_mode<synchronous>, transform_indices = @transform_3, window_bounds = array<i64: 128, 128>}, {pipeline_mode = #tpu.pipeline_mode<synchronous>, transform_indices = @transform_4, window_bounds = array<i64: 128, 128>}, {pipeline_mode = #tpu.pipeline_mode<synchronous>, transform_indices = @transform_5, window_bounds = array<i64: 8, 128>}, {pipeline_mode = #tpu.pipeline_mode<synchronous>, transform_indices = @transform_6, window_bounds = array<i64: 128, 256>}, {pipeline_mode = #tpu.pipeline_mode<synchronous>, transform_indices = @transform_7, window_bounds = array<i64: 1, 256>}, {transform_indices = @transform_8, window_bounds = array<i64: 128, 128>}]} {
    %c0 = arith.constant 0 : index
    %c0_0 = arith.constant 0 : index
    %0 = vector.load %arg1[%c0, %c0_0] : memref<128x64xf32, #tpu.memory_space<vmem>>, vector<128x64xf32>
    %c0_1 = arith.constant 0 : index
    %c0_2 = arith.constant 0 : index
    %1 = vector.load %arg2[%c0_1, %c0_2] : memref<64x256xf32, #tpu.memory_space<vmem>>, vector<64x256xf32>
    %cst = arith.constant dense<0.000000e+00> : vector<128x256xf32>
    %2 = tpu.matmul %0, %1, %cst {dimension_numbers = #tpu.dot_dimension_numbers<[1], [0], [0], [1], [0, 0, 1, 1], [], []>} : vector<128x64xf32>, vector<64x256xf32>, vector<128x256xf32> -> vector<128x256xf32>
    %c0_3 = arith.constant 0 : index
    %c0_4 = arith.constant 0 : index
    %3 = vector.load %arg3[%c0_3, %c0_4] : memref<1x256xf32, #tpu.memory_space<vmem>>, vector<1x256xf32>
    %4 = vector.broadcast %3 : vector<1x256xf32> to vector<128x256xf32>
    %5 = arith.addf %2, %4 : vector<128x256xf32>
    %6 = vector.extract_strided_slice %5 {offsets = [0, 128], sizes = [128, 128], strides = [1, 1]} : vector<128x256xf32> to vector<128x128xf32>
    %7 = vector.extract_strided_slice %5 {offsets = [0, 0], sizes = [128, 128], strides = [1, 1]} : vector<128x256xf32> to vector<128x128xf32>
    %c0_5 = arith.constant 0 : index
    %c0_6 = arith.constant 0 : index
    %8 = vector.load %arg6[%c0_5, %c0_6] : memref<8x128xf32, #tpu.memory_space<vmem>>, vector<1x128xf32>
    %c1 = arith.constant 1 : index
    %c0_7 = arith.constant 0 : index
    %9 = vector.load %arg6[%c1, %c0_7] : memref<8x128xf32, #tpu.memory_space<vmem>>, vector<1x128xf32>
    %cst_8 = arith.constant 0.000000e+00 : f32
    %10 = vector.broadcast %cst_8 : f32 to vector<128x128xf32>
    %11 = arith.maximumf %7, %10 : vector<128x128xf32>
    %cst_9 = arith.constant dense<0.000000e+00> : vector<128xf32>
    %12 = vector.multi_reduction <add>, %11, %cst_9 [1] : vector<128x128xf32> to vector<128xf32>
    %13 = vector.shape_cast %12 : vector<128xf32> to vector<128x1xf32>
    %cst_10 = arith.constant 1.280000e+02 : f32
    %14 = vector.broadcast %cst_10 : f32 to vector<128x1xf32>
    %15 = arith.divf %13, %14 : vector<128x1xf32>
    %16 = arith.mulf %11, %11 : vector<128x128xf32>
    %cst_11 = arith.constant dense<0.000000e+00> : vector<128xf32>
    %17 = vector.multi_reduction <add>, %16, %cst_11 [1] : vector<128x128xf32> to vector<128xf32>
    %18 = vector.shape_cast %17 : vector<128xf32> to vector<128x1xf32>
    %cst_12 = arith.constant 1.280000e+02 : f32
    %19 = vector.broadcast %cst_12 : f32 to vector<128x1xf32>
    %20 = arith.divf %18, %19 : vector<128x1xf32>
    %21 = arith.mulf %15, %15 : vector<128x1xf32>
    %22 = arith.subf %20, %21 : vector<128x1xf32>
    %cst_13 = arith.constant 9.99999974E-6 : f32
    %23 = vector.broadcast %cst_13 : f32 to vector<128x1xf32>
    %24 = arith.addf %22, %23 : vector<128x1xf32>
    %25 = math.rsqrt %24 : vector<128x1xf32>
    %26 = vector.broadcast %8 : vector<1x128xf32> to vector<128x128xf32>
    %27 = vector.broadcast %25 : vector<128x1xf32> to vector<128x128xf32>
    %28 = arith.mulf %26, %27 : vector<128x128xf32>
    %29 = vector.broadcast %15 : vector<128x1xf32> to vector<128x128xf32>
    %30 = arith.subf %11, %29 : vector<128x128xf32>
    %31 = arith.mulf %30, %28 : vector<128x128xf32>
    %32 = vector.broadcast %9 : vector<1x128xf32> to vector<128x128xf32>
    %33 = arith.addf %31, %32 : vector<128x128xf32>
    %c0_14 = arith.constant 0 : index
    %c0_15 = arith.constant 0 : index
    %34 = vector.load %arg4[%c0_14, %c0_15] : memref<128x128xf32, #tpu.memory_space<vmem>>, vector<128x128xf32>
    %cst_16 = arith.constant dense<0.000000e+00> : vector<128x128xf32>
    %35 = tpu.matmul %33, %34, %cst_16 {dimension_numbers = #tpu.dot_dimension_numbers<[1], [0], [0], [1], [0, 0, 1, 1], [], []>} : vector<128x128xf32>, vector<128x128xf32>, vector<128x128xf32> -> vector<128x128xf32>
    %c2 = arith.constant 2 : index
    %c0_17 = arith.constant 0 : index
    %36 = vector.load %arg6[%c2, %c0_17] : memref<8x128xf32, #tpu.memory_space<vmem>>, vector<1x128xf32>
    %37 = vector.broadcast %36 : vector<1x128xf32> to vector<128x128xf32>
    %38 = arith.addf %35, %37 : vector<128x128xf32>
    %c3 = arith.constant 3 : index
    %c0_18 = arith.constant 0 : index
    %39 = vector.load %arg6[%c3, %c0_18] : memref<8x128xf32, #tpu.memory_space<vmem>>, vector<1x128xf32>
    %c4 = arith.constant 4 : index
    %c0_19 = arith.constant 0 : index
    %40 = vector.load %arg6[%c4, %c0_19] : memref<8x128xf32, #tpu.memory_space<vmem>>, vector<1x128xf32>
    %cst_20 = arith.constant 0.000000e+00 : f32
    %41 = vector.broadcast %cst_20 : f32 to vector<128x128xf32>
    %42 = arith.maximumf %38, %41 : vector<128x128xf32>
    %cst_21 = arith.constant dense<0.000000e+00> : vector<128xf32>
    %43 = vector.multi_reduction <add>, %42, %cst_21 [1] : vector<128x128xf32> to vector<128xf32>
    %44 = vector.shape_cast %43 : vector<128xf32> to vector<128x1xf32>
    %cst_22 = arith.constant 1.280000e+02 : f32
    %45 = vector.broadcast %cst_22 : f32 to vector<128x1xf32>
    %46 = arith.divf %44, %45 : vector<128x1xf32>
    %47 = arith.mulf %42, %42 : vector<128x128xf32>
    %cst_23 = arith.constant dense<0.000000e+00> : vector<128xf32>
    %48 = vector.multi_reduction <add>, %47, %cst_23 [1] : vector<128x128xf32> to vector<128xf32>
    %49 = vector.shape_cast %48 : vector<128xf32> to vector<128x1xf32>
    %cst_24 = arith.constant 1.280000e+02 : f32
    %50 = vector.broadcast %cst_24 : f32 to vector<128x1xf32>
    %51 = arith.divf %49, %50 : vector<128x1xf32>
    %52 = arith.mulf %46, %46 : vector<128x1xf32>
    %53 = arith.subf %51, %52 : vector<128x1xf32>
    %cst_25 = arith.constant 9.99999974E-6 : f32
    %54 = vector.broadcast %cst_25 : f32 to vector<128x1xf32>
    %55 = arith.addf %53, %54 : vector<128x1xf32>
    %56 = math.rsqrt %55 : vector<128x1xf32>
    %57 = vector.broadcast %39 : vector<1x128xf32> to vector<128x128xf32>
    %58 = vector.broadcast %56 : vector<128x1xf32> to vector<128x128xf32>
    %59 = arith.mulf %57, %58 : vector<128x128xf32>
    %60 = vector.broadcast %46 : vector<128x1xf32> to vector<128x128xf32>
    %61 = arith.subf %42, %60 : vector<128x128xf32>
    %62 = arith.mulf %61, %59 : vector<128x128xf32>
    %63 = vector.broadcast %40 : vector<1x128xf32> to vector<128x128xf32>
    %64 = arith.addf %62, %63 : vector<128x128xf32>
    %c0_26 = arith.constant 0 : index
    %c0_27 = arith.constant 0 : index
    %65 = vector.load %arg5[%c0_26, %c0_27] : memref<128x128xf32, #tpu.memory_space<vmem>>, vector<128x128xf32>
    %cst_28 = arith.constant dense<0.000000e+00> : vector<128x128xf32>
    %66 = tpu.matmul %64, %65, %cst_28 {dimension_numbers = #tpu.dot_dimension_numbers<[1], [0], [0], [1], [0, 0, 1, 1], [], []>} : vector<128x128xf32>, vector<128x128xf32>, vector<128x128xf32> -> vector<128x128xf32>
    %c5 = arith.constant 5 : index
    %c0_29 = arith.constant 0 : index
    %67 = vector.load %arg6[%c5, %c0_29] : memref<8x128xf32, #tpu.memory_space<vmem>>, vector<1x128xf32>
    %68 = vector.broadcast %67 : vector<1x128xf32> to vector<128x128xf32>
    %69 = arith.addf %66, %68 : vector<128x128xf32>
    %c6 = arith.constant 6 : index
    %c0_30 = arith.constant 0 : index
    %70 = vector.load %arg6[%c6, %c0_30] : memref<8x128xf32, #tpu.memory_space<vmem>>, vector<1x128xf32>
    %c7 = arith.constant 7 : index
    %c0_31 = arith.constant 0 : index
    %71 = vector.load %arg6[%c7, %c0_31] : memref<8x128xf32, #tpu.memory_space<vmem>>, vector<1x128xf32>
    %cst_32 = arith.constant 0.000000e+00 : f32
    %72 = vector.broadcast %cst_32 : f32 to vector<128x128xf32>
    %73 = arith.maximumf %69, %72 : vector<128x128xf32>
    %cst_33 = arith.constant dense<0.000000e+00> : vector<128xf32>
    %74 = vector.multi_reduction <add>, %73, %cst_33 [1] : vector<128x128xf32> to vector<128xf32>
    %75 = vector.shape_cast %74 : vector<128xf32> to vector<128x1xf32>
    %cst_34 = arith.constant 1.280000e+02 : f32
    %76 = vector.broadcast %cst_34 : f32 to vector<128x1xf32>
    %77 = arith.divf %75, %76 : vector<128x1xf32>
    %78 = arith.mulf %73, %73 : vector<128x128xf32>
    %cst_35 = arith.constant dense<0.000000e+00> : vector<128xf32>
    %79 = vector.multi_reduction <add>, %78, %cst_35 [1] : vector<128x128xf32> to vector<128xf32>
    %80 = vector.shape_cast %79 : vector<128xf32> to vector<128x1xf32>
    %cst_36 = arith.constant 1.280000e+02 : f32
    %81 = vector.broadcast %cst_36 : f32 to vector<128x1xf32>
    %82 = arith.divf %80, %81 : vector<128x1xf32>
    %83 = arith.mulf %77, %77 : vector<128x1xf32>
    %84 = arith.subf %82, %83 : vector<128x1xf32>
    %cst_37 = arith.constant 9.99999974E-6 : f32
    %85 = vector.broadcast %cst_37 : f32 to vector<128x1xf32>
    %86 = arith.addf %84, %85 : vector<128x1xf32>
    %87 = math.rsqrt %86 : vector<128x1xf32>
    %88 = vector.broadcast %70 : vector<1x128xf32> to vector<128x128xf32>
    %89 = vector.broadcast %87 : vector<128x1xf32> to vector<128x128xf32>
    %90 = arith.mulf %88, %89 : vector<128x128xf32>
    %91 = vector.broadcast %77 : vector<128x1xf32> to vector<128x128xf32>
    %92 = arith.subf %73, %91 : vector<128x128xf32>
    %93 = arith.mulf %92, %90 : vector<128x128xf32>
    %94 = vector.broadcast %71 : vector<1x128xf32> to vector<128x128xf32>
    %95 = arith.addf %93, %94 : vector<128x128xf32>
    %c0_38 = arith.constant 0 : index
    %c0_39 = arith.constant 0 : index
    %96 = vector.load %arg7[%c0_38, %c0_39] : memref<128x256xf32, #tpu.memory_space<vmem>>, vector<128x256xf32>
    %cst_40 = arith.constant dense<0.000000e+00> : vector<128x256xf32>
    %97 = tpu.matmul %95, %96, %cst_40 {dimension_numbers = #tpu.dot_dimension_numbers<[1], [0], [0], [1], [0, 0, 1, 1], [], []>} : vector<128x128xf32>, vector<128x256xf32>, vector<128x256xf32> -> vector<128x256xf32>
    %c0_41 = arith.constant 0 : index
    %c0_42 = arith.constant 0 : index
    %98 = vector.load %arg8[%c0_41, %c0_42] : memref<1x256xf32, #tpu.memory_space<vmem>>, vector<1x256xf32>
    %99 = vector.broadcast %98 : vector<1x256xf32> to vector<128x256xf32>
    %100 = arith.addf %97, %99 : vector<128x256xf32>
    %101 = vector.extract_strided_slice %100 {offsets = [0, 0], sizes = [128, 128], strides = [1, 1]} : vector<128x256xf32> to vector<128x128xf32>
    %102 = arith.negf %101 : vector<128x128xf32>
    %103 = math.exp %102 : vector<128x128xf32>
    %cst_43 = arith.constant 1.000000e+00 : f32
    %104 = vector.broadcast %cst_43 : f32 to vector<128x128xf32>
    %105 = arith.addf %104, %103 : vector<128x128xf32>
    %106 = arith.divf %104, %105 : vector<128x128xf32>
    %107 = vector.extract_strided_slice %100 {offsets = [0, 128], sizes = [128, 128], strides = [1, 1]} : vector<128x256xf32> to vector<128x128xf32>
    %108 = arith.mulf %106, %107 : vector<128x128xf32>
    %109 = arith.addf %6, %108 : vector<128x128xf32>
    %c0_44 = arith.constant 0 : index
    %c0_45 = arith.constant 0 : index
    %110 = vector.load %arg9[%c0_44, %c0_45] : memref<128x128xf32, #tpu.memory_space<vmem>>, vector<128x128xf32>
    tpu.vector_store %arg9[%c0_44, %c0_45], %109 {strides = array<i32>} : memref<128x128xf32, #tpu.memory_space<vmem>>, vector<128x128xf32>,
    return
  }
  func.func @transform_0(%arg0: i32) -> (i32, i32) {
    %c0_i32 = arith.constant 0 : i32
    %c0_i32_0 = arith.constant 0 : i32
    return %arg0, %c0_i32 : i32, i32
  }
  func.func @transform_1(%arg0: i32) -> (i32, i32) {
    %c0_i32 = arith.constant 0 : i32
    %c0_i32_0 = arith.constant 0 : i32
    %c0_i32_1 = arith.constant 0 : i32
    return %c0_i32, %c0_i32_0 : i32, i32
  }
  func.func @transform_2(%arg0: i32) -> (i32, i32) {
    %c0_i32 = arith.constant 0 : i32
    %c0_i32_0 = arith.constant 0 : i32
    %c0_i32_1 = arith.constant 0 : i32
    return %c0_i32, %c0_i32_0 : i32, i32
  }
  func.func @transform_3(%arg0: i32) -> (i32, i32) {
    %c0_i32 = arith.constant 0 : i32
    %c0_i32_0 = arith.constant 0 : i32
    %c0_i32_1 = arith.constant 0 : i32
    return %c0_i32, %c0_i32_0 : i32, i32
  }
  func.func @transform_4(%arg0: i32) -> (i32, i32) {
    %c0_i32 = arith.constant 0 : i32
    %c0_i32_0 = arith.constant 0 : i32
    %c0_i32_1 = arith.constant 0 : i32
    return %c0_i32, %c0_i32_0 : i32, i32
  }
  func.func @transform_5(%arg0: i32) -> (i32, i32) {
    %c0_i32 = arith.constant 0 : i32
    %c0_i32_0 = arith.constant 0 : i32
    %c0_i32_1 = arith.constant 0 : i32
    return %c0_i32, %c0_i32_0 : i32, i32
  }
  func.func @transform_6(%arg0: i32) -> (i32, i32) {
    %c0_i32 = arith.constant 0 : i32
    %c0_i32_0 = arith.constant 0 : i32
    %c0_i32_1 = arith.constant 0 : i32
    return %c0_i32, %c0_i32_0 : i32, i32
  }
  func.func @transform_7(%arg0: i32) -> (i32, i32) {
    %c0_i32 = arith.constant 0 : i32
    %c0_i32_0 = arith.constant 0 : i32
    %c0_i32_1 = arith.constant 0 : i32
    return %c0_i32, %c0_i32_0 : i32, i32
  }
  func.func @transform_8(%arg0: i32) -> (i32, i32) {
    %c0_i32 = arith.constant 0 : i32
    %c0_i32_0 = arith.constant 0 : i32
    return %arg0, %c0_i32 : i32, i32
  }
}

</mosaic_0001>

<llo_original>
// kernel: tpu_custom_call.1
$region0: #{tpu_custom_call.1}
  #allocation0 [shape = 'u32[]', space=smem, size = 0x4, offset = 0x4, fixed_abs, tag = 'smem constant byte address 0x4 - core index']
  #allocation1 [shape = 'u32[144,128]{1,0:T(1,128)}', space=vmem, size = 0x12000, scoped, tag = 'internal scratch']
  %s0 = inlined_call_operand.vmem [shape: f32[512,64], index: 0, kind: input, shape index: {}]
  %s1 = inlined_call_operand.vmem [shape: f32[64,256], index: 1, kind: input, shape index: {}]
  %s2 = inlined_call_operand.vmem [shape: f32[1,256], index: 2, kind: input, shape index: {}]
  %s3 = inlined_call_operand.vmem [shape: f32[128,128], index: 3, kind: input, shape index: {}]
  %s4 = inlined_call_operand.vmem [shape: f32[128,128], index: 4, kind: input, shape index: {}]
  %s5 = inlined_call_operand.vmem [shape: f32[8,128], index: 5, kind: input, shape index: {}]
  %s6 = inlined_call_operand.vmem [shape: f32[128,256], index: 6, kind: input, shape index: {}]
  %s7 = inlined_call_operand.vmem [shape: f32[1,256], index: 7, kind: input, shape index: {}]
  %s8 = inlined_call_operand.hbm [shape: f32[512,128], index: 8, kind: output, shape index: {}]
  %s9 = sld [smem:[#allocation0]]
  $region65: #{tpu_custom_call.1} parent=0
    _
  %s11 = ssub.s32 1, %s9
  %s12 = scalar_select 0, %s11, %s9
  $region1: #{tpu_custom_call.1} parent=0
    #allocation2 [shape = 'u8[131072]{0}', space=vmem, size = 0x20000, scoped, tag = 'output window, operand 0']
    #allocation3 [shape = 's32[2]{0}', space=sflag, size = 0x8, scoped, tag = 'scoped memory for tpu_custom_call.1']
    %13 = vsyncpa [#allocation3], 0
    %s14 = scalar_lea.sflag [#allocation3], 1
    %15 = vsyncpa %s14, 0
    loop: start=0, step=1, limit=6
    $region2: #{tpu_custom_call.1} parent=1 // loop_pre_header
      _
    $region3: #{tpu_custom_call.1} parent=1 // loop_header
      %s17 = sphi 0, %s21
      %p18 = scmp.ge.s32.totalorder %s17, 6
      %s27 = sphi 0, %s29
      %s30 = sphi 0, %s27
      %s31 = sphi 0, %s30
      %s47 = sphi 0, %s31
      %s51 = sphi 0, %s51
      %s53 = sphi 0, %s51
      %s54 = sphi 0, %s53
      %s68 = sphi 0, %s54
      %s72 = sphi 0, %s72
      %s74 = sphi 0, %s72
      %s75 = sphi 0, %s74
      %s89 = sphi 0, %s75
      %s93 = sphi 0, %s93
      %s95 = sphi 0, %s93
      %s96 = sphi 0, %s95
      %s110 = sphi 0, %s96
      %s114 = sphi 0, %s114
      %s116 = sphi 0, %s114
      %s117 = sphi 0, %s116
      %s131 = sphi 0, %s117
      %s135 = sphi 0, %s135
      %s137 = sphi 0, %s135
      %s138 = sphi 0, %s137
      %s152 = sphi 0, %s138
      %s156 = sphi 0, %s156
      %s158 = sphi 0, %s156
      %s159 = sphi 0, %s158
      %s173 = sphi 0, %s159
      %s177 = sphi 0, %s177
      %s179 = sphi 0, %s177
      %s180 = sphi 0, %s179
      %s194 = sphi 0, %s180
      %s200 = sphi 0, %s202
      %s203 = sphi 0, %s200
      %s204 = sphi 0, %s203
      %s220 = sphi 0, %s204
    $region4: #{tpu_custom_call.1} parent=1 // loop_header_branch
      %20 = sbr.rel (%p18) target = $region8
    $region5: #{tpu_custom_call.1} parent=1 // loop_body
      %s22 = ssub.s32 %s17, 1
      %s23 = ssub.s32 %s17, 2
      %s24 = sadd.s32 %s17, 1
      %s25 = ssub.s32 %s17, %s24
      %p26 = scmp.eq.s32.totalorder %s25, 0
      %s28 = sadd.s32 %s27, 1
      %s29 = scalar_select %p26, %s27, %s28
      %p32 = pneg %p26
      %p33 = scmp.eq.s32.totalorder %s17, 3
      %p34 = por %p32, %p33
      %p35 = scmp.ne.s32.totalorder %s27, %s30
      %p36 = scmp.eq.s32.totalorder %s17, 0
      %p37 = por %p35, %p36
      %p38 = scmp.ne.s32.totalorder %s27, %s30
      %p39 = scmp.eq.s32.totalorder %s22, 3
      %p40 = por %p38, %p39
      %p41 = scmp.ne.s32.totalorder %s30, %s31
      %p42 = scmp.eq.s32.totalorder %s22, 0
      %p43 = por %p41, %p42
      %p44 = scmp.ne.s32.totalorder %s30, %s31
      %p45 = scmp.eq.s32.totalorder %s23, 3
      %p46 = por %p44, %p45
      %p48 = scmp.ne.s32.totalorder %s31, %s47
      %p49 = scmp.eq.s32.totalorder %s23, 0
      %p50 = por %p48, %p49
      %s52 = sadd.s32 %s51, 1
      %p55 = scmp.eq.s32.totalorder %s17, 3
      %p56 = scmp.ne.s32.totalorder %s51, %s53
      %p57 = scmp.eq.s32.totalorder %s17, 0
      %p58 = por %p56, %p57
      %p59 = scmp.ne.s32.totalorder %s51, %s53
      %p60 = scmp.eq.s32.totalorder %s22, 3
      %p61 = por %p59, %p60
      %p62 = scmp.ne.s32.totalorder %s53, %s54
      %p63 = scmp.eq.s32.totalorder %s22, 0
      %p64 = por %p62, %p63
      %p65 = scmp.ne.s32.totalorder %s53, %s54
      %p66 = scmp.eq.s32.totalorder %s23, 3
      %p67 = por %p65, %p66
      %p69 = scmp.ne.s32.totalorder %s54, %s68
      %p70 = scmp.eq.s32.totalorder %s23, 0
      %p71 = por %p69, %p70
      %s73 = sadd.s32 %s72, 1
      %p76 = scmp.eq.s32.totalorder %s17, 3
      %p77 = scmp.ne.s32.totalorder %s72, %s74
      %p78 = scmp.eq.s32.totalorder %s17, 0
      %p79 = por %p77, %p78
      %p80 = scmp.ne.s32.totalorder %s72, %s74
      %p81 = scmp.eq.s32.totalorder %s22, 3
      %p82 = por %p80, %p81
      %p83 = scmp.ne.s32.totalorder %s74, %s75
      %p84 = scmp.eq.s32.totalorder %s22, 0
      %p85 = por %p83, %p84
      %p86 = scmp.ne.s32.totalorder %s74, %s75
      %p87 = scmp.eq.s32.totalorder %s23, 3
      %p88 = por %p86, %p87
      %p90 = scmp.ne.s32.totalorder %s75, %s89
      %p91 = scmp.eq.s32.totalorder %s23, 0
      %p92 = por %p90, %p91
      %s94 = sadd.s32 %s93, 1
      %p97 = scmp.eq.s32.totalorder %s17, 3
      %p98 = scmp.ne.s32.totalorder %s93, %s95
      %p99 = scmp.eq.s32.totalorder %s17, 0
      %p100 = por %p98, %p99
      %p101 = scmp.ne.s32.totalorder %s93, %s95
      %p102 = scmp.eq.s32.totalorder %s22, 3
      %p103 = por %p101, %p102
      %p104 = scmp.ne.s32.totalorder %s95, %s96
      %p105 = scmp.eq.s32.totalorder %s22, 0
      %p106 = por %p104, %p105
      %p107 = scmp.ne.s32.totalorder %s95, %s96
      %p108 = scmp.eq.s32.totalorder %s23, 3
      %p109 = por %p107, %p108
      %p111 = scmp.ne.s32.totalorder %s96, %s110
      %p112 = scmp.eq.s32.totalorder %s23, 0
      %p113 = por %p111, %p112
      %s115 = sadd.s32 %s114, 1
      %p118 = scmp.eq.s32.totalorder %s17, 3
      %p119 = scmp.ne.s32.totalorder %s114, %s116
      %p120 = scmp.eq.s32.totalorder %s17, 0
      %p121 = por %p119, %p120
      %p122 = scmp.ne.s32.totalorder %s114, %s116
      %p123 = scmp.eq.s32.totalorder %s22, 3
      %p124 = por %p122, %p123
      %p125 = scmp.ne.s32.totalorder %s116, %s117
      %p126 = scmp.eq.s32.totalorder %s22, 0
      %p127 = por %p125, %p126
      %p128 = scmp.ne.s32.totalorder %s116, %s117
      %p129 = scmp.eq.s32.totalorder %s23, 3
      %p130 = por %p128, %p129
      %p132 = scmp.ne.s32.totalorder %s117, %s131
      %p133 = scmp.eq.s32.totalorder %s23, 0
      %p134 = por %p132, %p133
      %s136 = sadd.s32 %s135, 1
      %p139 = scmp.eq.s32.totalorder %s17, 3
      %p140 = scmp.ne.s32.totalorder %s135, %s137
      %p141 = scmp.eq.s32.totalorder %s17, 0
      %p142 = por %p140, %p141
      %p143 = scmp.ne.s32.totalorder %s135, %s137
      %p144 = scmp.eq.s32.totalorder %s22, 3
      %p145 = por %p143, %p144
      %p146 = scmp.ne.s32.totalorder %s137, %s138
      %p147 = scmp.eq.s32.totalorder %s22, 0
      %p148 = por %p146, %p147
      %p149 = scmp.ne.s32.totalorder %s137, %s138
      %p150 = scmp.eq.s32.totalorder %s23, 3
      %p151 = por %p149, %p150
      %p153 = scmp.ne.s32.totalorder %s138, %s152
      %p154 = scmp.eq.s32.totalorder %s23, 0
      %p155 = por %p153, %p154
      %s157 = sadd.s32 %s156, 1
      %p160 = scmp.eq.s32.totalorder %s17, 3
      %p161 = scmp.ne.s32.totalorder %s156, %s158
      %p162 = scmp.eq.s32.totalorder %s17, 0
      %p163 = por %p161, %p162
      %p164 = scmp.ne.s32.totalorder %s156, %s158
      %p165 = scmp.eq.s32.totalorder %s22, 3
      %p166 = por %p164, %p165
      %p167 = scmp.ne.s32.totalorder %s158, %s159
      %p168 = scmp.eq.s32.totalorder %s22, 0
      %p169 = por %p167, %p168
      %p170 = scmp.ne.s32.totalorder %s158, %s159
      %p171 = scmp.eq.s32.totalorder %s23, 3
      %p172 = por %p170, %p171
      %p174 = scmp.ne.s32.totalorder %s159, %s173
      %p175 = scmp.eq.s32.totalorder %s23, 0
      %p176 = por %p174, %p175
      %s178 = sadd.s32 %s177, 1
      %p181 = scmp.eq.s32.totalorder %s17, 3
      %p182 = scmp.ne.s32.totalorder %s177, %s179
      %p183 = scmp.eq.s32.totalorder %s17, 0
      %p184 = por %p182, %p183
      %p185 = scmp.ne.s32.totalorder %s177, %s179
      %p186 = scmp.eq.s32.totalorder %s22, 3
      %p187 = por %p185, %p186
      %p188 = scmp.ne.s32.totalorder %s179, %s180
      %p189 = scmp.eq.s32.totalorder %s22, 0
      %p190 = por %p188, %p189
      %p191 = scmp.ne.s32.totalorder %s179, %s180
      %p192 = scmp.eq.s32.totalorder %s23, 3
      %p193 = por %p191, %p192
      %p195 = scmp.ne.s32.totalorder %s180, %s194
      %p196 = scmp.eq.s32.totalorder %s23, 0
      %p197 = por %p195, %p196
      %s198 = ssub.s32 %s17, %s24
      %p199 = scmp.eq.s32.totalorder %s198, 0
      %s201 = sadd.s32 %s200, 1
      %s202 = scalar_select %p199, %s200, %s201
      %p205 = pneg %p199
      %p206 = scmp.eq.s32.totalorder %s17, 3
      %p207 = por %p205, %p206
      %p208 = scmp.ne.s32.totalorder %s200, %s203
      %p209 = scmp.eq.s32.totalorder %s17, 0
      %p210 = por %p208, %p209
      %p211 = scmp.ne.s32.totalorder %s200, %s203
      %p212 = scmp.eq.s32.totalorder %s22, 3
      %p213 = por %p211, %p212
      %p214 = scmp.ne.s32.totalorder %s203, %s204
      %p215 = scmp.eq.s32.totalorder %s22, 0
      %p216 = por %p214, %p215
      %p217 = scmp.ne.s32.totalorder %s203, %s204
      %p218 = scmp.eq.s32.totalorder %s23, 3
      %p219 = por %p217, %p218
      %p221 = scmp.ne.s32.totalorder %s204, %s220
      %p222 = scmp.eq.s32.totalorder %s23, 0
      %p223 = por %p221, %p222
      %p224 = scmp.le.s32.totalorder 1, %s17
      %p225 = scmp.lt.s32.totalorder %s17, 5
      %p226 = pnand %p224, %p225
      %p227 = pneg %p226
      // Predicated region
      $region9: #{tpu_custom_call.1} parent=5 // pred_check
        _
      $region10: #{tpu_custom_call.1} parent=5 // pred_check_branch
        %229 = sbr.rel (%p226) target = $region12
      $region11: #{tpu_custom_call.1} parent=5 // pred_region
        %s230 = ssub.s32 %s17, 1
        // Predicated region
        $region13: #{tpu_custom_call.1} parent=11 // pred_check
          %p231 = pneg %p64
        $region14: #{tpu_custom_call.1} parent=11 // pred_check_branch
          %233 = sbr.rel (%p231) target = $region16
        $region15: #{tpu_custom_call.1} parent=11 // pred_region
          _
        $region16: #{tpu_custom_call.1} parent=11 // pred_fallthru
          _
        // Predicated region
        $region17: #{tpu_custom_call.1} parent=11 // pred_check
          %p234 = pneg %p85
        $region18: #{tpu_custom_call.1} parent=11 // pred_check_branch
          %236 = sbr.rel (%p234) target = $region20
        $region19: #{tpu_custom_call.1} parent=11 // pred_region
          _
        $region20: #{tpu_custom_call.1} parent=11 // pred_fallthru
          _
        // Predicated region
        $region21: #{tpu_custom_call.1} parent=11 // pred_check
          %p237 = pneg %p106
        $region22: #{tpu_custom_call.1} parent=11 // pred_check_branch
          %239 = sbr.rel (%p237) target = $region24
        $region23: #{tpu_custom_call.1} parent=11 // pred_region
          _
        $region24: #{tpu_custom_call.1} parent=11 // pred_fallthru
          _
        // Predicated region
        $region25: #{tpu_custom_call.1} parent=11 // pred_check
          %p240 = pneg %p127
        $region26: #{tpu_custom_call.1} parent=11 // pred_check_branch
          %242 = sbr.rel (%p240) target = $region28
        $region27: #{tpu_custom_call.1} parent=11 // pred_region
          _
        $region28: #{tpu_custom_call.1} parent=11 // pred_fallthru
          _
        // Predicated region
        $region29: #{tpu_custom_call.1} parent=11 // pred_check
          %p243 = pneg %p148
        $region30: #{tpu_custom_call.1} parent=11 // pred_check_branch
          %245 = sbr.rel (%p243) target = $region32
        $region31: #{tpu_custom_call.1} parent=11 // pred_region
          _
        $region32: #{tpu_custom_call.1} parent=11 // pred_fallthru
          _
        // Predicated region
        $region33: #{tpu_custom_call.1} parent=11 // pred_check
          %p246 = pneg %p169
        $region34: #{tpu_custom_call.1} parent=11 // pred_check_branch
          %248 = sbr.rel (%p246) target = $region36
        $region35: #{tpu_custom_call.1} parent=11 // pred_region
          _
        $region36: #{tpu_custom_call.1} parent=11 // pred_fallthru
          _
        // Predicated region
        $region37: #{tpu_custom_call.1} parent=11 // pred_check
          %p249 = pneg %p190
        $region38: #{tpu_custom_call.1} parent=11 // pred_check_branch
          %251 = sbr.rel (%p249) target = $region40
        $region39: #{tpu_custom_call.1} parent=11 // pred_region
          _
        $region40: #{tpu_custom_call.1} parent=11 // pred_fallthru
          _
      $region12: #{tpu_custom_call.1} parent=5 // pred_fallthru
        _
      %p252 = scmp.lt.s32.totalorder %s17, 4
      // Predicated region
      $region41: #{tpu_custom_call.1} parent=5 // pred_check
        %p253 = pneg %p252
      $region42: #{tpu_custom_call.1} parent=5 // pred_check_branch
        %255 = sbr.rel (%p253) target = $region44
      $region43: #{tpu_custom_call.1} parent=5 // pred_region
        // Predicated region
        $region45: #{tpu_custom_call.1} parent=43 // pred_check
          %p256 = pneg %p37
        $region46: #{tpu_custom_call.1} parent=43 // pred_check_branch
          %258 = sbr.rel (%p256) target = $region48
        $region47: #{tpu_custom_call.1} parent=43 // pred_region
          %s259 = smul.u32 16, %s17
          %p260 = scmp.lt.s32.totalorder %s259, 63
          %s261 = scalar_select %p260, %s259, 63
          %s262 = smul.addr %s261, 8
          %s263 = scalar_lea.vmem %s0, %s262
          %s264 = smul.u32 16, %s17
        $region48: #{tpu_custom_call.1} parent=43 // pred_fallthru
          _
      $region44: #{tpu_custom_call.1} parent=5 // pred_fallthru
        _
      %p265 = scmp.le.s32.totalorder 1, %s17
      %p266 = scmp.lt.s32.totalorder %s17, 5
      %p267 = pnand %p265, %p266
      %p268 = pneg %p267
      // Predicated region
      $region49: #{tpu_custom_call.1} parent=5 // pred_check
        _
      $region50: #{tpu_custom_call.1} parent=5 // pred_check_branch
        %270 = sbr.rel (%p267) target = $region52
      $region51: #{tpu_custom_call.1} parent=5 // pred_region
        %s271 = ssub.s32 %s17, 1
        %s272 = smul.u32 16, %s22
        %p273 = scmp.lt.s32.totalorder %s272, 63
        %s274 = scalar_select %p273, %s272, 63
        %s275 = smul.addr %s274, 8
        %s276 = scalar_lea.vmem %s0, %s275
        %p277 = pneg %p43
        %p278 = pneg %p40
        %p279 = pneg %p64
        %p280 = pneg %p61
        %p281 = pneg %p85
        %p282 = pneg %p82
        %p283 = pneg %p106
        %p284 = pneg %p103
        %p285 = pneg %p127
        %p286 = pneg %p124
        %p287 = pneg %p148
        %p288 = pneg %p145
        %p289 = pneg %p169
        %p290 = pneg %p166
        %p291 = pneg %p190
        %p292 = pneg %p187
        %p293 = pneg %p216
        %p294 = pneg %p213
        %s295 = sand.u32 %s203, 1
        %s296 = scalar_lea.sflag [#allocation3], %s295
        %s297 = sand.u32 %s203, 1
        %s298 = smul.addr %s297, 128
        %s299 = scalar_lea.vmem [#allocation2], %s298
        %s300 = smul.u32 16, %s22
        %p301 = scmp.lt.s32.totalorder %s300, 63
        %s302 = scalar_select %p301, %s300, 63
        %s303 = smul.addr %s302, 8
        %s304 = scalar_lea.vmem %s0, %s303
        %s305 = smul.u32 16, %s22
        %s306 = smul.u32 16, %s22
        %v307 = vld [vmem:[%s304] sm:$0xff]
        %v308 = vld [vmem:[%s304 + $0x8] sm:$0xff]
        %v309 = vld [vmem:[%s304 + $0x10] sm:$0xff]
        %v310 = vld [vmem:[%s304 + $0x18] sm:$0xff]
        %v311 = vld [vmem:[%s304 + $0x20] sm:$0xff]
        %v312 = vld [vmem:[%s304 + $0x28] sm:$0xff]
        %v313 = vld [vmem:[%s304 + $0x30] sm:$0xff]
        %v314 = vld [vmem:[%s304 + $0x38] sm:$0xff]
        %v315 = vld [vmem:[%s304 + $0x40] sm:$0xff]
        %v316 = vld [vmem:[%s304 + $0x48] sm:$0xff]
        %v317 = vld [vmem:[%s304 + $0x50] sm:$0xff]
        %v318 = vld [vmem:[%s304 + $0x58] sm:$0xff]
        %v319 = vld [vmem:[%s304 + $0x60] sm:$0xff]
        %v320 = vld [vmem:[%s304 + $0x68] sm:$0xff]
        %v321 = vld [vmem:[%s304 + $0x70] sm:$0xff]
        %v322 = vld [vmem:[%s304 + $0x78] sm:$0xff]
        %v323 = vld [vmem:[%s1] sm:$0xff]
        %v324 = vld [vmem:[%s1 + $0x8] sm:$0xff]
        %v325 = vld [vmem:[%s1 + $0x10] sm:$0xff]
        %v326 = vld [vmem:[%s1 + $0x18] sm:$0xff]
        %v327 = vld [vmem:[%s1 + $0x20] sm:$0xff]
        %v328 = vld [vmem:[%s1 + $0x28] sm:$0xff]
        %v329 = vld [vmem:[%s1 + $0x30] sm:$0xff]
        %v330 = vld [vmem:[%s1 + $0x38] sm:$0xff]
        %v331 = vld [vmem:[%s1 + $0x40] sm:$0xff]
        %v332 = vld [vmem:[%s1 + $0x48] sm:$0xff]
        %v333 = vld [vmem:[%s1 + $0x50] sm:$0xff]
        %v334 = vld [vmem:[%s1 + $0x58] sm:$0xff]
        %v335 = vld [vmem:[%s1 + $0x60] sm:$0xff]
        %v336 = vld [vmem:[%s1 + $0x68] sm:$0xff]
        %v337 = vld [vmem:[%s1 + $0x70] sm:$0xff]
        %v338 = vld [vmem:[%s1 + $0x78] sm:$0xff]
        %v339 = vld [vmem:[%s2] sm:$0x3]
        %v341 = vlaneseq
        %v342 = vshrl.u32 %v341, 7
        %v343 = vsub.s32 0, %v342
        %v344 = vrot.slane %v339, %v343
        %v345 = vlaneseq
        %v346 = vshrl.u32 %v345, 7
        %v347 = vsub.s32 1, %v346
        %v348 = vrot.slane %v339, %v347
        %vm351 = vcmask 523264
        %v353 = vsel %vm351, %v307, 0
        %v356 = vsel %vm351, %v308, 0
        %v359 = vsel %vm351, %v309, 0
        %v362 = vsel %vm351, %v310, 0
        %v365 = vsel %vm351, %v311, 0
        %v368 = vsel %vm351, %v312, 0
        %v371 = vsel %vm351, %v313, 0
        %v374 = vsel %vm351, %v314, 0
        %v377 = vsel %vm351, %v315, 0
        %v380 = vsel %vm351, %v316, 0
        %v383 = vsel %vm351, %v317, 0
        %v386 = vsel %vm351, %v318, 0
        %v389 = vsel %vm351, %v319, 0
        %v392 = vsel %vm351, %v320, 0
        %v395 = vsel %vm351, %v321, 0
        %v398 = vsel %vm351, %v322, 0
        %400 = vmatprep.subr.mxu0 0.0
        %401 = vmatpush1.msra.mxu0 0.0
        %402 = vmatprep.subr.mxu0 0.0
        %403 = vmatpush1.msra.mxu0 0.0
        %404 = vmatprep.subr.mxu0 0.0
        %405 = vmatpush1.msra.mxu0 0.0
        %406 = vmatprep.subr.mxu0 0.0
        %407 = vmatpush1.msra.mxu0 0.0
        %408 = vmatprep.subr.mxu0 0.0
        %409 = vmatpush1.msra.mxu0 0.0
        %410 = vmatprep.subr.mxu0 0.0
        %411 = vmatpush1.msra.mxu0 0.0
        %412 = vmatprep.subr.mxu0 0.0
        %413 = vmatpush1.msra.mxu0 0.0
        %414 = vmatprep.subr.mxu0 0.0
        %415 = vmatpush1.msra.mxu0 0.0
        %416 = vmatprep.subr.mxu0 %v338
        %417 = vmatpush1.msra.mxu0 %v337
        %418 = vmatprep.subr.mxu0 %v336
        %419 = vmatpush1.msra.mxu0 %v335
        %420 = vmatprep.subr.mxu0 %v334
        %421 = vmatpush1.msra.mxu0 %v333
        %422 = vmatprep.subr.mxu0 %v332
        %423 = vmatpush1.msra.mxu0 %v331
        %424 = vmatprep.subr.mxu0 %v330
        %425 = vmatpush1.msra.mxu0 %v329
        %426 = vmatprep.subr.mxu0 %v328
        %427 = vmatpush1.msra.mxu0 %v327
        %428 = vmatprep.subr.mxu0 %v326
        %429 = vmatpush1.msra.mxu0 %v325
        %430 = vmatprep.subr.mxu0 %v324
        %431 = vmatpush1.msra.mxu0 %v323
        %432 = vmatprep.subr.mxu0 0.0
        %433 = vmatpush2.msra.mxu0 0.0
        %434 = vmatprep.subr.mxu0 0.0
        %435 = vmatpush2.msra.mxu0 0.0
        %436 = vmatprep.subr.mxu0 0.0
        %437 = vmatpush2.msra.mxu0 0.0
        %438 = vmatprep.subr.mxu0 0.0
        %439 = vmatpush2.msra.mxu0 0.0
        %440 = vmatprep.subr.mxu0 0.0
        %441 = vmatpush2.msra.mxu0 0.0
        %442 = vmatprep.subr.mxu0 0.0
        %443 = vmatpush2.msra.mxu0 0.0
        %444 = vmatprep.subr.mxu0 0.0
        %445 = vmatpush2.msra.mxu0 0.0
        %446 = vmatprep.subr.mxu0 0.0
        %447 = vmatpush2.msra.mxu0 0.0
        %448 = vmatprep.subr.mxu0 0.0
        %449 = vmatpush2.msra.mxu0 0.0
        %450 = vmatprep.subr.mxu0 0.0
        %451 = vmatpush2.msra.mxu0 0.0
        %452 = vmatprep.subr.mxu0 0.0
        %453 = vmatpush2.msra.mxu0 0.0
        %454 = vmatprep.subr.mxu0 0.0
        %455 = vmatpush2.msra.mxu0 0.0
        %456 = vmatprep.subr.mxu0 0.0
        %457 = vmatpush2.msra.mxu0 0.0
        %458 = vmatprep.subr.mxu0 0.0
        %459 = vmatpush2.msra.mxu0 0.0
        %460 = vmatprep.subr.mxu0 0.0
        %461 = vmatpush2.msra.mxu0 0.0
        %462 = vmatprep.subr.mxu0 0.0
        %463 = vmatpush2.msra.mxu0 0.0
        %464 = vmatprep.mubr.f32.mxu0 0.0
        %465 = vmatmul.mubr.f32.gmra.mxu0 %v353
        %v466 = vpop.f32.mrf.mxu0
        %v467 = vadd.f32 %v344, %v466
        %v468 = vpop.f32.mrf.mxu0
        %v469 = vadd.f32 %v348, %v468
        %470 = vmatprep.mubr.f32.mxu0 0.0
        %471 = vmatmul.mubr.f32.gmra.mxu0 %v356
        %v472 = vpop.f32.mrf.mxu0
        %v473 = vadd.f32 %v344, %v472
        %v474 = vpop.f32.mrf.mxu0
        %v475 = vadd.f32 %v348, %v474
        %476 = vmatprep.mubr.f32.mxu0 0.0
        %477 = vmatmul.mubr.f32.gmra.mxu0 %v359
        %v478 = vpop.f32.mrf.mxu0
        %v479 = vadd.f32 %v344, %v478
        %v480 = vpop.f32.mrf.mxu0
        %v481 = vadd.f32 %v348, %v480
        %482 = vmatprep.mubr.f32.mxu0 0.0
        %483 = vmatmul.mubr.f32.gmra.mxu0 %v362
        %v484 = vpop.f32.mrf.mxu0
        %v485 = vadd.f32 %v344, %v484
        %v486 = vpop.f32.mrf.mxu0
        %v487 = vadd.f32 %v348, %v486
        %488 = vmatprep.mubr.f32.mxu0 0.0
        %489 = vmatmul.mubr.f32.gmra.mxu0 %v365
        %v490 = vpop.f32.mrf.mxu0
        %v491 = vadd.f32 %v344, %v490
        %v492 = vpop.f32.mrf.mxu0
        %v493 = vadd.f32 %v348, %v492
        %494 = vmatprep.mubr.f32.mxu0 0.0
        %495 = vmatmul.mubr.f32.gmra.mxu0 %v368
        %v496 = vpop.f32.mrf.mxu0
        %v497 = vadd.f32 %v344, %v496
        %v498 = vpop.f32.mrf.mxu0
        %v499 = vadd.f32 %v348, %v498
        %500 = vmatprep.mubr.f32.mxu0 0.0
        %501 = vmatmul.mubr.f32.gmra.mxu0 %v371
        %v502 = vpop.f32.mrf.mxu0
        %v503 = vadd.f32 %v344, %v502
        %v504 = vpop.f32.mrf.mxu0
        %v505 = vadd.f32 %v348, %v504
        %506 = vmatprep.mubr.f32.mxu0 0.0
        %507 = vmatmul.mubr.f32.gmra.mxu0 %v374
        %v508 = vpop.f32.mrf.mxu0
        %v509 = vadd.f32 %v344, %v508
        %v510 = vpop.f32.mrf.mxu0
        %v511 = vadd.f32 %v348, %v510
        %512 = vmatprep.mubr.f32.mxu0 0.0
        %513 = vmatmul.mubr.f32.gmra.mxu0 %v377
        %v514 = vpop.f32.mrf.mxu0
        %v515 = vadd.f32 %v344, %v514
        %v516 = vpop.f32.mrf.mxu0
        %v517 = vadd.f32 %v348, %v516
        %518 = vmatprep.mubr.f32.mxu0 0.0
        %519 = vmatmul.mubr.f32.gmra.mxu0 %v380
        %v520 = vpop.f32.mrf.mxu0
        %v521 = vadd.f32 %v344, %v520
        %v522 = vpop.f32.mrf.mxu0
        %v523 = vadd.f32 %v348, %v522
        %524 = vmatprep.mubr.f32.mxu0 0.0
        %525 = vmatmul.mubr.f32.gmra.mxu0 %v383
        %v526 = vpop.f32.mrf.mxu0
        %v527 = vadd.f32 %v344, %v526
        %v528 = vpop.f32.mrf.mxu0
        %v529 = vadd.f32 %v348, %v528
        %530 = vmatprep.mubr.f32.mxu0 0.0
        %531 = vmatmul.mubr.f32.gmra.mxu0 %v386
        %v532 = vpop.f32.mrf.mxu0
        %v533 = vadd.f32 %v344, %v532
        %v534 = vpop.f32.mrf.mxu0
        %v535 = vadd.f32 %v348, %v534
        %536 = vmatprep.mubr.f32.mxu0 0.0
        %537 = vmatmul.mubr.f32.gmra.mxu0 %v389
        %v538 = vpop.f32.mrf.mxu0
        %v539 = vadd.f32 %v344, %v538
        %v540 = vpop.f32.mrf.mxu0
        %v541 = vadd.f32 %v348, %v540
        %542 = vmatprep.mubr.f32.mxu0 0.0
        %543 = vmatmul.mubr.f32.gmra.mxu0 %v392
        %v544 = vpop.f32.mrf.mxu0
        %v545 = vadd.f32 %v344, %v544
        %v546 = vpop.f32.mrf.mxu0
        %v547 = vadd.f32 %v348, %v546
        %548 = vmatprep.mubr.f32.mxu0 0.0
        %549 = vmatmul.mubr.f32.gmra.mxu0 %v395
        %v550 = vpop.f32.mrf.mxu0
        %v551 = vadd.f32 %v344, %v550
        %v552 = vpop.f32.mrf.mxu0
        %v553 = vadd.f32 %v348, %v552
        %554 = vmatprep.mubr.f32.mxu0 0.0
        %555 = vmatmul.mubr.f32.gmra.mxu0 %v398
        %v556 = vpop.f32.mrf.mxu0
        %v557 = vadd.f32 %v344, %v556
        %v558 = vpop.f32.mrf.mxu0
        %v559 = vadd.f32 %v348, %v558
        %560 = vdwg.mxu0
        %v561 = vld [vmem:[%s5] sm:$0x1]
        %v562 = vld [vmem:[%s5 + $0x1] sm:$0x1]
        %v563 = vmax.f32 %v467, 0.0
        %v564 = vmax.f32 %v473, 0.0
        %v565 = vmax.f32 %v479, 0.0
        %v566 = vmax.f32 %v485, 0.0
        %v567 = vmax.f32 %v491, 0.0
        %v568 = vmax.f32 %v497, 0.0
        %v569 = vmax.f32 %v503, 0.0
        %v570 = vmax.f32 %v509, 0.0
        %v571 = vmax.f32 %v515, 0.0
        %v572 = vmax.f32 %v521, 0.0
        %v573 = vmax.f32 %v527, 0.0
        %v574 = vmax.f32 %v533, 0.0
        %v575 = vmax.f32 %v539, 0.0
        %v576 = vmax.f32 %v545, 0.0
        %v577 = vmax.f32 %v551, 0.0
        %v578 = vmax.f32 %v557, 0.0
        %579 = vadd.xlane.f32.xlu0 %v563
        %v580 = vpop.xlane.xlu0 %579
        %581 = vadd.xlane.f32.xlu0 %v564
        %v582 = vpop.xlane.xlu0 %581
        %583 = vadd.xlane.f32.xlu0 %v565
        %v584 = vpop.xlane.xlu0 %583
        %585 = vadd.xlane.f32.xlu0 %v566
        %v586 = vpop.xlane.xlu0 %585
        %587 = vadd.xlane.f32.xlu0 %v567
        %v588 = vpop.xlane.xlu0 %587
        %589 = vadd.xlane.f32.xlu0 %v568
        %v590 = vpop.xlane.xlu0 %589
        %591 = vadd.xlane.f32.xlu0 %v569
        %v592 = vpop.xlane.xlu0 %591
        %593 = vadd.xlane.f32.xlu0 %v570
        %v594 = vpop.xlane.xlu0 %593
        %595 = vadd.xlane.f32.xlu0 %v571
        %v596 = vpop.xlane.xlu0 %595
        %597 = vadd.xlane.f32.xlu0 %v572
        %v598 = vpop.xlane.xlu0 %597
        %599 = vadd.xlane.f32.xlu0 %v573
        %v600 = vpop.xlane.xlu0 %599
        %601 = vadd.xlane.f32.xlu0 %v574
        %v602 = vpop.xlane.xlu0 %601
        %603 = vadd.xlane.f32.xlu0 %v575
        %v604 = vpop.xlane.xlu0 %603
        %605 = vadd.xlane.f32.xlu0 %v576
        %v606 = vpop.xlane.xlu0 %605
        %607 = vadd.xlane.f32.xlu0 %v577
        %v608 = vpop.xlane.xlu0 %607
        %609 = vadd.xlane.f32.xlu0 %v578
        %v610 = vpop.xlane.xlu0 %609
        %v611 = vrcp.pop 128.0
        %v612 = vmul.f32 %v580, %v611
        %v613 = vmul.f32 %v582, %v611
        %v614 = vmul.f32 %v584, %v611
        %v615 = vmul.f32 %v586, %v611
        %v616 = vmul.f32 %v588, %v611
        %v617 = vmul.f32 %v590, %v611
        %v618 = vmul.f32 %v592, %v611
        %v619 = vmul.f32 %v594, %v611
        %v620 = vmul.f32 %v596, %v611
        %v621 = vmul.f32 %v598, %v611
        %v622 = vmul.f32 %v600, %v611
        %v623 = vmul.f32 %v602, %v611
        %v624 = vmul.f32 %v604, %v611
        %v625 = vmul.f32 %v606, %v611
        %v626 = vmul.f32 %v608, %v611
        %v627 = vmul.f32 %v610, %v611
        %v628 = vmul.f32 %v563, %v563
        %v629 = vmul.f32 %v564, %v564
        %v630 = vmul.f32 %v565, %v565
        %v631 = vmul.f32 %v566, %v566
        %v632 = vmul.f32 %v567, %v567
        %v633 = vmul.f32 %v568, %v568
        %v634 = vmul.f32 %v569, %v569
        %v635 = vmul.f32 %v570, %v570
        %v636 = vmul.f32 %v571, %v571
        %v637 = vmul.f32 %v572, %v572
        %v638 = vmul.f32 %v573, %v573
        %v639 = vmul.f32 %v574, %v574
        %v640 = vmul.f32 %v575, %v575
        %v641 = vmul.f32 %v576, %v576
        %v642 = vmul.f32 %v577, %v577
        %v643 = vmul.f32 %v578, %v578
        %644 = vadd.xlane.f32.xlu0 %v628
        %v645 = vpop.xlane.xlu0 %644
        %646 = vadd.xlane.f32.xlu0 %v629
        %v647 = vpop.xlane.xlu0 %646
        %648 = vadd.xlane.f32.xlu0 %v630
        %v649 = vpop.xlane.xlu0 %648
        %650 = vadd.xlane.f32.xlu0 %v631
        %v651 = vpop.xlane.xlu0 %650
        %652 = vadd.xlane.f32.xlu0 %v632
        %v653 = vpop.xlane.xlu0 %652
        %654 = vadd.xlane.f32.xlu0 %v633
        %v655 = vpop.xlane.xlu0 %654
        %656 = vadd.xlane.f32.xlu0 %v634
        %v657 = vpop.xlane.xlu0 %656
        %658 = vadd.xlane.f32.xlu0 %v635
        %v659 = vpop.xlane.xlu0 %658
        %660 = vadd.xlane.f32.xlu0 %v636
        %v661 = vpop.xlane.xlu0 %660
        %662 = vadd.xlane.f32.xlu0 %v637
        %v663 = vpop.xlane.xlu0 %662
        %664 = vadd.xlane.f32.xlu0 %v638
        %v665 = vpop.xlane.xlu0 %664
        %666 = vadd.xlane.f32.xlu0 %v639
        %v667 = vpop.xlane.xlu0 %666
        %668 = vadd.xlane.f32.xlu0 %v640
        %v669 = vpop.xlane.xlu0 %668
        %670 = vadd.xlane.f32.xlu0 %v641
        %v671 = vpop.xlane.xlu0 %670
        %672 = vadd.xlane.f32.xlu0 %v642
        %v673 = vpop.xlane.xlu0 %672
        %674 = vadd.xlane.f32.xlu0 %v643
        %v675 = vpop.xlane.xlu0 %674
        %v676 = vmul.f32 %v645, %v611
        %v677 = vmul.f32 %v647, %v611
        %v678 = vmul.f32 %v649, %v611
        %v679 = vmul.f32 %v651, %v611
        %v680 = vmul.f32 %v653, %v611
        %v681 = vmul.f32 %v655, %v611
        %v682 = vmul.f32 %v657, %v611
        %v683 = vmul.f32 %v659, %v611
        %v684 = vmul.f32 %v661, %v611
        %v685 = vmul.f32 %v663, %v611
        %v686 = vmul.f32 %v665, %v611
        %v687 = vmul.f32 %v667, %v611
        %v688 = vmul.f32 %v669, %v611
        %v689 = vmul.f32 %v671, %v611
        %v690 = vmul.f32 %v673, %v611
        %v691 = vmul.f32 %v675, %v611
        %v692 = vmul.f32 %v612, %v612
        %v693 = vmul.f32 %v613, %v613
        %v694 = vmul.f32 %v614, %v614
        %v695 = vmul.f32 %v615, %v615
        %v696 = vmul.f32 %v616, %v616
        %v697 = vmul.f32 %v617, %v617
        %v698 = vmul.f32 %v618, %v618
        %v699 = vmul.f32 %v619, %v619
        %v700 = vmul.f32 %v620, %v620
        %v701 = vmul.f32 %v621, %v621
        %v702 = vmul.f32 %v622, %v622
        %v703 = vmul.f32 %v623, %v623
        %v704 = vmul.f32 %v624, %v624
        %v705 = vmul.f32 %v625, %v625
        %v706 = vmul.f32 %v626, %v626
        %v707 = vmul.f32 %v627, %v627
        %v708 = vsub.f32 %v676, %v692
        %v709 = vsub.f32 %v677, %v693
        %v710 = vsub.f32 %v678, %v694
        %v711 = vsub.f32 %v679, %v695
        %v712 = vsub.f32 %v680, %v696
        %v713 = vsub.f32 %v681, %v697
        %v714 = vsub.f32 %v682, %v698
        %v715 = vsub.f32 %v683, %v699
        %v716 = vsub.f32 %v684, %v700
        %v717 = vsub.f32 %v685, %v701
        %v718 = vsub.f32 %v686, %v702
        %v719 = vsub.f32 %v687, %v703
        %v720 = vsub.f32 %v688, %v704
        %v721 = vsub.f32 %v689, %v705
        %v722 = vsub.f32 %v690, %v706
        %v723 = vsub.f32 %v691, %v707
        %v724 = vadd.f32 %v708, 1e-05
        %v725 = vadd.f32 %v709, 1e-05
        %v726 = vadd.f32 %v710, 1e-05
        %v727 = vadd.f32 %v711, 1e-05
        %v728 = vadd.f32 %v712, 1e-05
        %v729 = vadd.f32 %v713, 1e-05
        %v730 = vadd.f32 %v714, 1e-05
        %v731 = vadd.f32 %v715, 1e-05
        %v732 = vadd.f32 %v716, 1e-05
        %v733 = vadd.f32 %v717, 1e-05
        %v734 = vadd.f32 %v718, 1e-05
        %v735 = vadd.f32 %v719, 1e-05
        %v736 = vadd.f32 %v720, 1e-05
        %v737 = vadd.f32 %v721, 1e-05
        %v738 = vadd.f32 %v722, 1e-05
        %v739 = vadd.f32 %v723, 1e-05
        %v740 = vrsqrt.pop %v724
        %v741 = vrsqrt.pop %v725
        %v742 = vrsqrt.pop %v726
        %v743 = vrsqrt.pop %v727
        %v744 = vrsqrt.pop %v728
        %v745 = vrsqrt.pop %v729
        %v746 = vrsqrt.pop %v730
        %v747 = vrsqrt.pop %v731
        %v748 = vrsqrt.pop %v732
        %v749 = vrsqrt.pop %v733
        %v750 = vrsqrt.pop %v734
        %v751 = vrsqrt.pop %v735
        %v752 = vrsqrt.pop %v736
        %v753 = vrsqrt.pop %v737
        %v754 = vrsqrt.pop %v738
        %v755 = vrsqrt.pop %v739
        %v756 = vlaneseq
        %v757 = vshrl.u32 %v756, 7
        %v758 = vsub.s32 0, %v757
        %v759 = vrot.slane %v561, %v758
        %v760 = vmul.f32 %v759, %v740
        %v761 = vmul.f32 %v759, %v741
        %v762 = vmul.f32 %v759, %v742
        %v763 = vmul.f32 %v759, %v743
        %v764 = vmul.f32 %v759, %v744
        %v765 = vmul.f32 %v759, %v745
        %v766 = vmul.f32 %v759, %v746
        %v767 = vmul.f32 %v759, %v747
        %v768 = vmul.f32 %v759, %v748
        %v769 = vmul.f32 %v759, %v749
        %v770 = vmul.f32 %v759, %v750
        %v771 = vmul.f32 %v759, %v751
        %v772 = vmul.f32 %v759, %v752
        %v773 = vmul.f32 %v759, %v753
        %v774 = vmul.f32 %v759, %v754
        %v775 = vmul.f32 %v759, %v755
        %v776 = vsub.f32 %v563, %v612
        %v777 = vsub.f32 %v564, %v613
        %v778 = vsub.f32 %v565, %v614
        %v779 = vsub.f32 %v566, %v615
        %v780 = vsub.f32 %v567, %v616
        %v781 = vsub.f32 %v568, %v617
        %v782 = vsub.f32 %v569, %v618
        %v783 = vsub.f32 %v570, %v619
        %v784 = vsub.f32 %v571, %v620
        %v785 = vsub.f32 %v572, %v621
        %v786 = vsub.f32 %v573, %v622
        %v787 = vsub.f32 %v574, %v623
        %v788 = vsub.f32 %v575, %v624
        %v789 = vsub.f32 %v576, %v625
        %v790 = vsub.f32 %v577, %v626
        %v791 = vsub.f32 %v578, %v627
        %v792 = vmul.f32 %v776, %v760
        %v793 = vmul.f32 %v777, %v761
        %v794 = vmul.f32 %v778, %v762
        %v795 = vmul.f32 %v779, %v763
        %v796 = vmul.f32 %v780, %v764
        %v797 = vmul.f32 %v781, %v765
        %v798 = vmul.f32 %v782, %v766
        %v799 = vmul.f32 %v783, %v767
        %v800 = vmul.f32 %v784, %v768
        %v801 = vmul.f32 %v785, %v769
        %v802 = vmul.f32 %v786, %v770
        %v803 = vmul.f32 %v787, %v771
        %v804 = vmul.f32 %v788, %v772
        %v805 = vmul.f32 %v789, %v773
        %v806 = vmul.f32 %v790, %v774
        %v807 = vmul.f32 %v791, %v775
        %v808 = vlaneseq
        %v809 = vshrl.u32 %v808, 7
        %v810 = vsub.s32 0, %v809
        %v811 = vrot.slane %v562, %v810
        %v812 = vadd.f32 %v792, %v811
        %v813 = vadd.f32 %v793, %v811
        %v814 = vadd.f32 %v794, %v811
        %v815 = vadd.f32 %v795, %v811
        %v816 = vadd.f32 %v796, %v811
        %v817 = vadd.f32 %v797, %v811
        %v818 = vadd.f32 %v798, %v811
        %v819 = vadd.f32 %v799, %v811
        %v820 = vadd.f32 %v800, %v811
        %v821 = vadd.f32 %v801, %v811
        %v822 = vadd.f32 %v802, %v811
        %v823 = vadd.f32 %v803, %v811
        %v824 = vadd.f32 %v804, %v811
        %v825 = vadd.f32 %v805, %v811
        %v826 = vadd.f32 %v806, %v811
        %v827 = vadd.f32 %v807, %v811
        %v828 = vld [vmem:[%s3] sm:$0xff]
        %v829 = vld [vmem:[%s3 + $0x8] sm:$0xff]
        %v830 = vld [vmem:[%s3 + $0x10] sm:$0xff]
        %v831 = vld [vmem:[%s3 + $0x18] sm:$0xff]
        %v832 = vld [vmem:[%s3 + $0x20] sm:$0xff]
        %v833 = vld [vmem:[%s3 + $0x28] sm:$0xff]
        %v834 = vld [vmem:[%s3 + $0x30] sm:$0xff]
        %v835 = vld [vmem:[%s3 + $0x38] sm:$0xff]
        %v836 = vld [vmem:[%s3 + $0x40] sm:$0xff]
        %v837 = vld [vmem:[%s3 + $0x48] sm:$0xff]
        %v838 = vld [vmem:[%s3 + $0x50] sm:$0xff]
        %v839 = vld [vmem:[%s3 + $0x58] sm:$0xff]
        %v840 = vld [vmem:[%s3 + $0x60] sm:$0xff]
        %v841 = vld [vmem:[%s3 + $0x68] sm:$0xff]
        %v842 = vld [vmem:[%s3 + $0x70] sm:$0xff]
        %v843 = vld [vmem:[%s3 + $0x78] sm:$0xff]
        %v844 = vld [vmem:[%s5 + $0x2] sm:$0x1]
        %v845 = vlaneseq
        %v846 = vshrl.u32 %v845, 7
        %v847 = vsub.s32 0, %v846
        %v848 = vrot.slane %v844, %v847
        %849 = vmatprep.subr.mxu0 0.0
        %850 = vmatpush1.msra.mxu0 %v843
        %851 = vmatprep.subr.mxu0 0.0
        %852 = vmatpush1.msra.mxu0 %v842
        %853 = vmatprep.subr.mxu0 0.0
        %854 = vmatpush1.msra.mxu0 %v841
        %855 = vmatprep.subr.mxu0 0.0
        %856 = vmatpush1.msra.mxu0 %v840
        %857 = vmatprep.subr.mxu0 0.0
        %858 = vmatpush1.msra.mxu0 %v839
        %859 = vmatprep.subr.mxu0 0.0
        %860 = vmatpush1.msra.mxu0 %v838
        %861 = vmatprep.subr.mxu0 0.0
        %862 = vmatpush1.msra.mxu0 %v837
        %863 = vmatprep.subr.mxu0 0.0
        %864 = vmatpush1.msra.mxu0 %v836
        %865 = vmatprep.subr.mxu0 0.0
        %866 = vmatpush1.msra.mxu0 %v835
        %867 = vmatprep.subr.mxu0 0.0
        %868 = vmatpush1.msra.mxu0 %v834
        %869 = vmatprep.subr.mxu0 0.0
        %870 = vmatpush1.msra.mxu0 %v833
        %871 = vmatprep.subr.mxu0 0.0
        %872 = vmatpush1.msra.mxu0 %v832
        %873 = vmatprep.subr.mxu0 0.0
        %874 = vmatpush1.msra.mxu0 %v831
        %875 = vmatprep.subr.mxu0 0.0
        %876 = vmatpush1.msra.mxu0 %v830
        %877 = vmatprep.subr.mxu0 0.0
        %878 = vmatpush1.msra.mxu0 %v829
        %879 = vmatprep.subr.mxu0 0.0
        %880 = vmatpush1.msra.mxu0 %v828
        %881 = vmatprep.subr.mxu0 0.0
        %882 = vmatpush2.msra.mxu0 0.0
        %883 = vmatprep.subr.mxu0 0.0
        %884 = vmatpush2.msra.mxu0 0.0
        %885 = vmatprep.subr.mxu0 0.0
        %886 = vmatpush2.msra.mxu0 0.0
        %887 = vmatprep.subr.mxu0 0.0
        %888 = vmatpush2.msra.mxu0 0.0
        %889 = vmatprep.subr.mxu0 0.0
        %890 = vmatpush2.msra.mxu0 0.0
        %891 = vmatprep.subr.mxu0 0.0
        %892 = vmatpush2.msra.mxu0 0.0
        %893 = vmatprep.subr.mxu0 0.0
        %894 = vmatpush2.msra.mxu0 0.0
        %895 = vmatprep.subr.mxu0 0.0
        %896 = vmatpush2.msra.mxu0 0.0
        %897 = vmatprep.subr.mxu0 0.0
        %898 = vmatpush2.msra.mxu0 0.0
        %899 = vmatprep.subr.mxu0 0.0
        %900 = vmatpush2.msra.mxu0 0.0
        %901 = vmatprep.subr.mxu0 0.0
        %902 = vmatpush2.msra.mxu0 0.0
        %903 = vmatprep.subr.mxu0 0.0
        %904 = vmatpush2.msra.mxu0 0.0
        %905 = vmatprep.subr.mxu0 0.0
        %906 = vmatpush2.msra.mxu0 0.0
        %907 = vmatprep.subr.mxu0 0.0
        %908 = vmatpush2.msra.mxu0 0.0
        %909 = vmatprep.subr.mxu0 0.0
        %910 = vmatpush2.msra.mxu0 0.0
        %911 = vmatprep.subr.mxu0 0.0
        %912 = vmatpush2.msra.mxu0 0.0
        %913 = vmatprep.mubr.f32.mxu0 0.0
        %914 = vmatmul.mubr.f32.gmra.mxu0 %v812
        %v915 = vpop.f32.mrf.mxu0
        %v916 = vadd.f32 %v848, %v915
        %v917 = vpop.f32.mrf.mxu0
        %918 = vmatprep.mubr.f32.mxu0 0.0
        %919 = vmatmul.mubr.f32.gmra.mxu0 %v813
        %v920 = vpop.f32.mrf.mxu0
        %v921 = vadd.f32 %v848, %v920
        %v922 = vpop.f32.mrf.mxu0
        %923 = vmatprep.mubr.f32.mxu0 0.0
        %924 = vmatmul.mubr.f32.gmra.mxu0 %v814
        %v925 = vpop.f32.mrf.mxu0
        %v926 = vadd.f32 %v848, %v925
        %v927 = vpop.f32.mrf.mxu0
        %928 = vmatprep.mubr.f32.mxu0 0.0
        %929 = vmatmul.mubr.f32.gmra.mxu0 %v815
        %v930 = vpop.f32.mrf.mxu0
        %v931 = vadd.f32 %v848, %v930
        %v932 = vpop.f32.mrf.mxu0
        %933 = vmatprep.mubr.f32.mxu0 0.0
        %934 = vmatmul.mubr.f32.gmra.mxu0 %v816
        %v935 = vpop.f32.mrf.mxu0
        %v936 = vadd.f32 %v848, %v935
        %v937 = vpop.f32.mrf.mxu0
        %938 = vmatprep.mubr.f32.mxu0 0.0
        %939 = vmatmul.mubr.f32.gmra.mxu0 %v817
        %v940 = vpop.f32.mrf.mxu0
        %v941 = vadd.f32 %v848, %v940
        %v942 = vpop.f32.mrf.mxu0
        %943 = vmatprep.mubr.f32.mxu0 0.0
        %944 = vmatmul.mubr.f32.gmra.mxu0 %v818
        %v945 = vpop.f32.mrf.mxu0
        %v946 = vadd.f32 %v848, %v945
        %v947 = vpop.f32.mrf.mxu0
        %948 = vmatprep.mubr.f32.mxu0 0.0
        %949 = vmatmul.mubr.f32.gmra.mxu0 %v819
        %v950 = vpop.f32.mrf.mxu0
        %v951 = vadd.f32 %v848, %v950
        %v952 = vpop.f32.mrf.mxu0
        %953 = vmatprep.mubr.f32.mxu0 0.0
        %954 = vmatmul.mubr.f32.gmra.mxu0 %v820
        %v955 = vpop.f32.mrf.mxu0
        %v956 = vadd.f32 %v848, %v955
        %v957 = vpop.f32.mrf.mxu0
        %958 = vmatprep.mubr.f32.mxu0 0.0
        %959 = vmatmul.mubr.f32.gmra.mxu0 %v821
        %v960 = vpop.f32.mrf.mxu0
        %v961 = vadd.f32 %v848, %v960
        %v962 = vpop.f32.mrf.mxu0
        %963 = vmatprep.mubr.f32.mxu0 0.0
        %964 = vmatmul.mubr.f32.gmra.mxu0 %v822
        %v965 = vpop.f32.mrf.mxu0
        %v966 = vadd.f32 %v848, %v965
        %v967 = vpop.f32.mrf.mxu0
        %968 = vmatprep.mubr.f32.mxu0 0.0
        %969 = vmatmul.mubr.f32.gmra.mxu0 %v823
        %v970 = vpop.f32.mrf.mxu0
        %v971 = vadd.f32 %v848, %v970
        %v972 = vpop.f32.mrf.mxu0
        %973 = vmatprep.mubr.f32.mxu0 0.0
        %974 = vmatmul.mubr.f32.gmra.mxu0 %v824
        %v975 = vpop.f32.mrf.mxu0
        %v976 = vadd.f32 %v848, %v975
        %v977 = vpop.f32.mrf.mxu0
        %978 = vmatprep.mubr.f32.mxu0 0.0
        %979 = vmatmul.mubr.f32.gmra.mxu0 %v825
        %v980 = vpop.f32.mrf.mxu0
        %v981 = vadd.f32 %v848, %v980
        %v982 = vpop.f32.mrf.mxu0
        %983 = vmatprep.mubr.f32.mxu0 0.0
        %984 = vmatmul.mubr.f32.gmra.mxu0 %v826
        %v985 = vpop.f32.mrf.mxu0
        %v986 = vadd.f32 %v848, %v985
        %v987 = vpop.f32.mrf.mxu0
        %988 = vmatprep.mubr.f32.mxu0 0.0
        %989 = vmatmul.mubr.f32.gmra.mxu0 %v827
        %v990 = vpop.f32.mrf.mxu0
        %v991 = vadd.f32 %v848, %v990
        %v992 = vpop.f32.mrf.mxu0
        %993 = vdwg.mxu0
        %v994 = vld [vmem:[%s5 + $0x3] sm:$0x1]
        %v995 = vld [vmem:[%s5 + $0x4] sm:$0x1]
        %v996 = vmax.f32 %v916, 0.0
        %v997 = vmax.f32 %v921, 0.0
        %v998 = vmax.f32 %v926, 0.0
        %v999 = vmax.f32 %v931, 0.0
        %v1000 = vmax.f32 %v936, 0.0
        %v1001 = vmax.f32 %v941, 0.0
        %v1002 = vmax.f32 %v946, 0.0
        %v1003 = vmax.f32 %v951, 0.0
        %v1004 = vmax.f32 %v956, 0.0
        %v1005 = vmax.f32 %v961, 0.0
        %v1006 = vmax.f32 %v966, 0.0
        %v1007 = vmax.f32 %v971, 0.0
        %v1008 = vmax.f32 %v976, 0.0
        %v1009 = vmax.f32 %v981, 0.0
        %v1010 = vmax.f32 %v986, 0.0
        %v1011 = vmax.f32 %v991, 0.0
        %1012 = vadd.xlane.f32.xlu0 %v996
        %v1013 = vpop.xlane.xlu0 %1012
        %1014 = vadd.xlane.f32.xlu0 %v997
        %v1015 = vpop.xlane.xlu0 %1014
        %1016 = vadd.xlane.f32.xlu0 %v998
        %v1017 = vpop.xlane.xlu0 %1016
        %1018 = vadd.xlane.f32.xlu0 %v999
        %v1019 = vpop.xlane.xlu0 %1018
        %1020 = vadd.xlane.f32.xlu0 %v1000
        %v1021 = vpop.xlane.xlu0 %1020
        %1022 = vadd.xlane.f32.xlu0 %v1001
        %v1023 = vpop.xlane.xlu0 %1022
        %1024 = vadd.xlane.f32.xlu0 %v1002
        %v1025 = vpop.xlane.xlu0 %1024
        %1026 = vadd.xlane.f32.xlu0 %v1003
        %v1027 = vpop.xlane.xlu0 %1026
        %1028 = vadd.xlane.f32.xlu0 %v1004
        %v1029 = vpop.xlane.xlu0 %1028
        %1030 = vadd.xlane.f32.xlu0 %v1005
        %v1031 = vpop.xlane.xlu0 %1030
        %1032 = vadd.xlane.f32.xlu0 %v1006
        %v1033 = vpop.xlane.xlu0 %1032
        %1034 = vadd.xlane.f32.xlu0 %v1007
        %v1035 = vpop.xlane.xlu0 %1034
        %1036 = vadd.xlane.f32.xlu0 %v1008
        %v1037 = vpop.xlane.xlu0 %1036
        %1038 = vadd.xlane.f32.xlu0 %v1009
        %v1039 = vpop.xlane.xlu0 %1038
        %1040 = vadd.xlane.f32.xlu0 %v1010
        %v1041 = vpop.xlane.xlu0 %1040
        %1042 = vadd.xlane.f32.xlu0 %v1011
        %v1043 = vpop.xlane.xlu0 %1042
        %v1044 = vmul.f32 %v1013, %v611
        %v1045 = vmul.f32 %v1015, %v611
        %v1046 = vmul.f32 %v1017, %v611
        %v1047 = vmul.f32 %v1019, %v611
        %v1048 = vmul.f32 %v1021, %v611
        %v1049 = vmul.f32 %v1023, %v611
        %v1050 = vmul.f32 %v1025, %v611
        %v1051 = vmul.f32 %v1027, %v611
        %v1052 = vmul.f32 %v1029, %v611
        %v1053 = vmul.f32 %v1031, %v611
        %v1054 = vmul.f32 %v1033, %v611
        %v1055 = vmul.f32 %v1035, %v611
        %v1056 = vmul.f32 %v1037, %v611
        %v1057 = vmul.f32 %v1039, %v611
        %v1058 = vmul.f32 %v1041, %v611
        %v1059 = vmul.f32 %v1043, %v611
        %v1060 = vmul.f32 %v996, %v996
        %v1061 = vmul.f32 %v997, %v997
        %v1062 = vmul.f32 %v998, %v998
        %v1063 = vmul.f32 %v999, %v999
        %v1064 = vmul.f32 %v1000, %v1000
        %v1065 = vmul.f32 %v1001, %v1001
        %v1066 = vmul.f32 %v1002, %v1002
        %v1067 = vmul.f32 %v1003, %v1003
        %v1068 = vmul.f32 %v1004, %v1004
        %v1069 = vmul.f32 %v1005, %v1005
        %v1070 = vmul.f32 %v1006, %v1006
        %v1071 = vmul.f32 %v1007, %v1007
        %v1072 = vmul.f32 %v1008, %v1008
        %v1073 = vmul.f32 %v1009, %v1009
        %v1074 = vmul.f32 %v1010, %v1010
        %v1075 = vmul.f32 %v1011, %v1011
        %1076 = vadd.xlane.f32.xlu0 %v1060
        %v1077 = vpop.xlane.xlu0 %1076
        %1078 = vadd.xlane.f32.xlu0 %v1061
        %v1079 = vpop.xlane.xlu0 %1078
        %1080 = vadd.xlane.f32.xlu0 %v1062
        %v1081 = vpop.xlane.xlu0 %1080
        %1082 = vadd.xlane.f32.xlu0 %v1063
        %v1083 = vpop.xlane.xlu0 %1082
        %1084 = vadd.xlane.f32.xlu0 %v1064
        %v1085 = vpop.xlane.xlu0 %1084
        %1086 = vadd.xlane.f32.xlu0 %v1065
        %v1087 = vpop.xlane.xlu0 %1086
        %1088 = vadd.xlane.f32.xlu0 %v1066
        %v1089 = vpop.xlane.xlu0 %1088
        %1090 = vadd.xlane.f32.xlu0 %v1067
        %v1091 = vpop.xlane.xlu0 %1090
        %1092 = vadd.xlane.f32.xlu0 %v1068
        %v1093 = vpop.xlane.xlu0 %1092
        %1094 = vadd.xlane.f32.xlu0 %v1069
        %v1095 = vpop.xlane.xlu0 %1094
        %1096 = vadd.xlane.f32.xlu0 %v1070
        %v1097 = vpop.xlane.xlu0 %1096
        %1098 = vadd.xlane.f32.xlu0 %v1071
        %v1099 = vpop.xlane.xlu0 %1098
        %1100 = vadd.xlane.f32.xlu0 %v1072
        %v1101 = vpop.xlane.xlu0 %1100
        %1102 = vadd.xlane.f32.xlu0 %v1073
        %v1103 = vpop.xlane.xlu0 %1102
        %1104 = vadd.xlane.f32.xlu0 %v1074
        %v1105 = vpop.xlane.xlu0 %1104
        %1106 = vadd.xlane.f32.xlu0 %v1075
        %v1107 = vpop.xlane.xlu0 %1106
        %v1108 = vmul.f32 %v1077, %v611
        %v1109 = vmul.f32 %v1079, %v611
        %v1110 = vmul.f32 %v1081, %v611
        %v1111 = vmul.f32 %v1083, %v611
        %v1112 = vmul.f32 %v1085, %v611
        %v1113 = vmul.f32 %v1087, %v611
        %v1114 = vmul.f32 %v1089, %v611
        %v1115 = vmul.f32 %v1091, %v611
        %v1116 = vmul.f32 %v1093, %v611
        %v1117 = vmul.f32 %v1095, %v611
        %v1118 = vmul.f32 %v1097, %v611
        %v1119 = vmul.f32 %v1099, %v611
        %v1120 = vmul.f32 %v1101, %v611
        %v1121 = vmul.f32 %v1103, %v611
        %v1122 = vmul.f32 %v1105, %v611
        %v1123 = vmul.f32 %v1107, %v611
        %v1124 = vmul.f32 %v1044, %v1044
        %v1125 = vmul.f32 %v1045, %v1045
        %v1126 = vmul.f32 %v1046, %v1046
        %v1127 = vmul.f32 %v1047, %v1047
        %v1128 = vmul.f32 %v1048, %v1048
        %v1129 = vmul.f32 %v1049, %v1049
        %v1130 = vmul.f32 %v1050, %v1050
        %v1131 = vmul.f32 %v1051, %v1051
        %v1132 = vmul.f32 %v1052, %v1052
        %v1133 = vmul.f32 %v1053, %v1053
        %v1134 = vmul.f32 %v1054, %v1054
        %v1135 = vmul.f32 %v1055, %v1055
        %v1136 = vmul.f32 %v1056, %v1056
        %v1137 = vmul.f32 %v1057, %v1057
        %v1138 = vmul.f32 %v1058, %v1058
        %v1139 = vmul.f32 %v1059, %v1059
        %v1140 = vsub.f32 %v1108, %v1124
        %v1141 = vsub.f32 %v1109, %v1125
        %v1142 = vsub.f32 %v1110, %v1126
        %v1143 = vsub.f32 %v1111, %v1127
        %v1144 = vsub.f32 %v1112, %v1128
        %v1145 = vsub.f32 %v1113, %v1129
        %v1146 = vsub.f32 %v1114, %v1130
        %v1147 = vsub.f32 %v1115, %v1131
        %v1148 = vsub.f32 %v1116, %v1132
        %v1149 = vsub.f32 %v1117, %v1133
        %v1150 = vsub.f32 %v1118, %v1134
        %v1151 = vsub.f32 %v1119, %v1135
        %v1152 = vsub.f32 %v1120, %v1136
        %v1153 = vsub.f32 %v1121, %v1137
        %v1154 = vsub.f32 %v1122, %v1138
        %v1155 = vsub.f32 %v1123, %v1139
        %v1156 = vadd.f32 %v1140, 1e-05
        %v1157 = vadd.f32 %v1141, 1e-05
        %v1158 = vadd.f32 %v1142, 1e-05
        %v1159 = vadd.f32 %v1143, 1e-05
        %v1160 = vadd.f32 %v1144, 1e-05
        %v1161 = vadd.f32 %v1145, 1e-05
        %v1162 = vadd.f32 %v1146, 1e-05
        %v1163 = vadd.f32 %v1147, 1e-05
        %v1164 = vadd.f32 %v1148, 1e-05
        %v1165 = vadd.f32 %v1149, 1e-05
        %v1166 = vadd.f32 %v1150, 1e-05
        %v1167 = vadd.f32 %v1151, 1e-05
        %v1168 = vadd.f32 %v1152, 1e-05
        %v1169 = vadd.f32 %v1153, 1e-05
        %v1170 = vadd.f32 %v1154, 1e-05
        %v1171 = vadd.f32 %v1155, 1e-05
        %v1172 = vrsqrt.pop %v1156
        %v1173 = vrsqrt.pop %v1157
        %v1174 = vrsqrt.pop %v1158
        %v1175 = vrsqrt.pop %v1159
        %v1176 = vrsqrt.pop %v1160
        %v1177 = vrsqrt.pop %v1161
        %v1178 = vrsqrt.pop %v1162
        %v1179 = vrsqrt.pop %v1163
        %v1180 = vrsqrt.pop %v1164
        %v1181 = vrsqrt.pop %v1165
        %v1182 = vrsqrt.pop %v1166
        %v1183 = vrsqrt.pop %v1167
        %v1184 = vrsqrt.pop %v1168
        %v1185 = vrsqrt.pop %v1169
        %v1186 = vrsqrt.pop %v1170
        %v1187 = vrsqrt.pop %v1171
        %v1188 = vlaneseq
        %v1189 = vshrl.u32 %v1188, 7
        %v1190 = vsub.s32 0, %v1189
        %v1191 = vrot.slane %v994, %v1190
        %v1192 = vmul.f32 %v1191, %v1172
        %v1193 = vmul.f32 %v1191, %v1173
        %v1194 = vmul.f32 %v1191, %v1174
        %v1195 = vmul.f32 %v1191, %v1175
        %v1196 = vmul.f32 %v1191, %v1176
        %v1197 = vmul.f32 %v1191, %v1177
        %v1198 = vmul.f32 %v1191, %v1178
        %v1199 = vmul.f32 %v1191, %v1179
        %v1200 = vmul.f32 %v1191, %v1180
        %v1201 = vmul.f32 %v1191, %v1181
        %v1202 = vmul.f32 %v1191, %v1182
        %v1203 = vmul.f32 %v1191, %v1183
        %v1204 = vmul.f32 %v1191, %v1184
        %v1205 = vmul.f32 %v1191, %v1185
        %v1206 = vmul.f32 %v1191, %v1186
        %v1207 = vmul.f32 %v1191, %v1187
        %v1208 = vsub.f32 %v996, %v1044
        %v1209 = vsub.f32 %v997, %v1045
        %v1210 = vsub.f32 %v998, %v1046
        %v1211 = vsub.f32 %v999, %v1047
        %v1212 = vsub.f32 %v1000, %v1048
        %v1213 = vsub.f32 %v1001, %v1049
        %v1214 = vsub.f32 %v1002, %v1050
        %v1215 = vsub.f32 %v1003, %v1051
        %v1216 = vsub.f32 %v1004, %v1052
        %v1217 = vsub.f32 %v1005, %v1053
        %v1218 = vsub.f32 %v1006, %v1054
        %v1219 = vsub.f32 %v1007, %v1055
        %v1220 = vsub.f32 %v1008, %v1056
        %v1221 = vsub.f32 %v1009, %v1057
        %v1222 = vsub.f32 %v1010, %v1058
        %v1223 = vsub.f32 %v1011, %v1059
        %v1224 = vmul.f32 %v1208, %v1192
        %v1225 = vmul.f32 %v1209, %v1193
        %v1226 = vmul.f32 %v1210, %v1194
        %v1227 = vmul.f32 %v1211, %v1195
        %v1228 = vmul.f32 %v1212, %v1196
        %v1229 = vmul.f32 %v1213, %v1197
        %v1230 = vmul.f32 %v1214, %v1198
        %v1231 = vmul.f32 %v1215, %v1199
        %v1232 = vmul.f32 %v1216, %v1200
        %v1233 = vmul.f32 %v1217, %v1201
        %v1234 = vmul.f32 %v1218, %v1202
        %v1235 = vmul.f32 %v1219, %v1203
        %v1236 = vmul.f32 %v1220, %v1204
        %v1237 = vmul.f32 %v1221, %v1205
        %v1238 = vmul.f32 %v1222, %v1206
        %v1239 = vmul.f32 %v1223, %v1207
        %v1240 = vlaneseq
        %v1241 = vshrl.u32 %v1240, 7
        %v1242 = vsub.s32 0, %v1241
        %v1243 = vrot.slane %v995, %v1242
        %v1244 = vadd.f32 %v1224, %v1243
        %v1245 = vadd.f32 %v1225, %v1243
        %v1246 = vadd.f32 %v1226, %v1243
        %v1247 = vadd.f32 %v1227, %v1243
        %v1248 = vadd.f32 %v1228, %v1243
        %v1249 = vadd.f32 %v1229, %v1243
        %v1250 = vadd.f32 %v1230, %v1243
        %v1251 = vadd.f32 %v1231, %v1243
        %v1252 = vadd.f32 %v1232, %v1243
        %v1253 = vadd.f32 %v1233, %v1243
        %v1254 = vadd.f32 %v1234, %v1243
        %v1255 = vadd.f32 %v1235, %v1243
        %v1256 = vadd.f32 %v1236, %v1243
        %v1257 = vadd.f32 %v1237, %v1243
        %v1258 = vadd.f32 %v1238, %v1243
        %v1259 = vadd.f32 %v1239, %v1243
        %v1260 = vld [vmem:[%s4] sm:$0xff]
        %v1261 = vld [vmem:[%s4 + $0x8] sm:$0xff]
        %v1262 = vld [vmem:[%s4 + $0x10] sm:$0xff]
        %v1263 = vld [vmem:[%s4 + $0x18] sm:$0xff]
        %v1264 = vld [vmem:[%s4 + $0x20] sm:$0xff]
        %v1265 = vld [vmem:[%s4 + $0x28] sm:$0xff]
        %v1266 = vld [vmem:[%s4 + $0x30] sm:$0xff]
        %v1267 = vld [vmem:[%s4 + $0x38] sm:$0xff]
        %v1268 = vld [vmem:[%s4 + $0x40] sm:$0xff]
        %v1269 = vld [vmem:[%s4 + $0x48] sm:$0xff]
        %v1270 = vld [vmem:[%s4 + $0x50] sm:$0xff]
        %v1271 = vld [vmem:[%s4 + $0x58] sm:$0xff]
        %v1272 = vld [vmem:[%s4 + $0x60] sm:$0xff]
        %v1273 = vld [vmem:[%s4 + $0x68] sm:$0xff]
        %v1274 = vld [vmem:[%s4 + $0x70] sm:$0xff]
        %v1275 = vld [vmem:[%s4 + $0x78] sm:$0xff]
        %v1276 = vld [vmem:[%s5 + $0x5] sm:$0x1]
        %v1277 = vlaneseq
        %v1278 = vshrl.u32 %v1277, 7
        %v1279 = vsub.s32 0, %v1278
        %v1280 = vrot.slane %v1276, %v1279
        %1281 = vmatprep.subr.mxu0 0.0
        %1282 = vmatpush1.msra.mxu0 %v1275
        %1283 = vmatprep.subr.mxu0 0.0
        %1284 = vmatpush1.msra.mxu0 %v1274
        %1285 = vmatprep.subr.mxu0 0.0
        %1286 = vmatpush1.msra.mxu0 %v1273
        %1287 = vmatprep.subr.mxu0 0.0
        %1288 = vmatpush1.msra.mxu0 %v1272
        %1289 = vmatprep.subr.mxu0 0.0
        %1290 = vmatpush1.msra.mxu0 %v1271
        %1291 = vmatprep.subr.mxu0 0.0
        %1292 = vmatpush1.msra.mxu0 %v1270
        %1293 = vmatprep.subr.mxu0 0.0
        %1294 = vmatpush1.msra.mxu0 %v1269
        %1295 = vmatprep.subr.mxu0 0.0
        %1296 = vmatpush1.msra.mxu0 %v1268
        %1297 = vmatprep.subr.mxu0 0.0
        %1298 = vmatpush1.msra.mxu0 %v1267
        %1299 = vmatprep.subr.mxu0 0.0
        %1300 = vmatpush1.msra.mxu0 %v1266
        %1301 = vmatprep.subr.mxu0 0.0
        %1302 = vmatpush1.msra.mxu0 %v1265
        %1303 = vmatprep.subr.mxu0 0.0
        %1304 = vmatpush1.msra.mxu0 %v1264
        %1305 = vmatprep.subr.mxu0 0.0
        %1306 = vmatpush1.msra.mxu0 %v1263
        %1307 = vmatprep.subr.mxu0 0.0
        %1308 = vmatpush1.msra.mxu0 %v1262
        %1309 = vmatprep.subr.mxu0 0.0
        %1310 = vmatpush1.msra.mxu0 %v1261
        %1311 = vmatprep.subr.mxu0 0.0
        %1312 = vmatpush1.msra.mxu0 %v1260
        %1313 = vmatprep.subr.mxu0 0.0
        %1314 = vmatpush2.msra.mxu0 0.0
        %1315 = vmatprep.subr.mxu0 0.0
        %1316 = vmatpush2.msra.mxu0 0.0
        %1317 = vmatprep.subr.mxu0 0.0
        %1318 = vmatpush2.msra.mxu0 0.0
        %1319 = vmatprep.subr.mxu0 0.0
        %1320 = vmatpush2.msra.mxu0 0.0
        %1321 = vmatprep.subr.mxu0 0.0
        %1322 = vmatpush2.msra.mxu0 0.0
        %1323 = vmatprep.subr.mxu0 0.0
        %1324 = vmatpush2.msra.mxu0 0.0
        %1325 = vmatprep.subr.mxu0 0.0
        %1326 = vmatpush2.msra.mxu0 0.0
        %1327 = vmatprep.subr.mxu0 0.0
        %1328 = vmatpush2.msra.mxu0 0.0
        %1329 = vmatprep.subr.mxu0 0.0
        %1330 = vmatpush2.msra.mxu0 0.0
        %1331 = vmatprep.subr.mxu0 0.0
        %1332 = vmatpush2.msra.mxu0 0.0
        %1333 = vmatprep.subr.mxu0 0.0
        %1334 = vmatpush2.msra.mxu0 0.0
        %1335 = vmatprep.subr.mxu0 0.0
        %1336 = vmatpush2.msra.mxu0 0.0
        %1337 = vmatprep.subr.mxu0 0.0
        %1338 = vmatpush2.msra.mxu0 0.0
        %1339 = vmatprep.subr.mxu0 0.0
        %1340 = vmatpush2.msra.mxu0 0.0
        %1341 = vmatprep.subr.mxu0 0.0
        %1342 = vmatpush2.msra.mxu0 0.0
        %1343 = vmatprep.subr.mxu0 0.0
        %1344 = vmatpush2.msra.mxu0 0.0
        %1345 = vmatprep.mubr.f32.mxu0 0.0
        %1346 = vmatmul.mubr.f32.gmra.mxu0 %v1244
        %v1347 = vpop.f32.mrf.mxu0
        %v1348 = vadd.f32 %v1280, %v1347
        %v1349 = vpop.f32.mrf.mxu0
        %1350 = vmatprep.mubr.f32.mxu0 0.0
        %1351 = vmatmul.mubr.f32.gmra.mxu0 %v1245
        %v1352 = vpop.f32.mrf.mxu0
        %v1353 = vadd.f32 %v1280, %v1352
        %v1354 = vpop.f32.mrf.mxu0
        %1355 = vmatprep.mubr.f32.mxu0 0.0
        %1356 = vmatmul.mubr.f32.gmra.mxu0 %v1246
        %v1357 = vpop.f32.mrf.mxu0
        %v1358 = vadd.f32 %v1280, %v1357
        %v1359 = vpop.f32.mrf.mxu0
        %1360 = vmatprep.mubr.f32.mxu0 0.0
        %1361 = vmatmul.mubr.f32.gmra.mxu0 %v1247
        %v1362 = vpop.f32.mrf.mxu0
        %v1363 = vadd.f32 %v1280, %v1362
        %v1364 = vpop.f32.mrf.mxu0
        %1365 = vmatprep.mubr.f32.mxu0 0.0
        %1366 = vmatmul.mubr.f32.gmra.mxu0 %v1248
        %v1367 = vpop.f32.mrf.mxu0
        %v1368 = vadd.f32 %v1280, %v1367
        %v1369 = vpop.f32.mrf.mxu0
        %1370 = vmatprep.mubr.f32.mxu0 0.0
        %1371 = vmatmul.mubr.f32.gmra.mxu0 %v1249
        %v1372 = vpop.f32.mrf.mxu0
        %v1373 = vadd.f32 %v1280, %v1372
        %v1374 = vpop.f32.mrf.mxu0
        %1375 = vmatprep.mubr.f32.mxu0 0.0
        %1376 = vmatmul.mubr.f32.gmra.mxu0 %v1250
        %v1377 = vpop.f32.mrf.mxu0
        %v1378 = vadd.f32 %v1280, %v1377
        %v1379 = vpop.f32.mrf.mxu0
        %1380 = vmatprep.mubr.f32.mxu0 0.0
        %1381 = vmatmul.mubr.f32.gmra.mxu0 %v1251
        %v1382 = vpop.f32.mrf.mxu0
        %v1383 = vadd.f32 %v1280, %v1382
        %v1384 = vpop.f32.mrf.mxu0
        %1385 = vmatprep.mubr.f32.mxu0 0.0
        %1386 = vmatmul.mubr.f32.gmra.mxu0 %v1252
        %v1387 = vpop.f32.mrf.mxu0
        %v1388 = vadd.f32 %v1280, %v1387
        %v1389 = vpop.f32.mrf.mxu0
        %1390 = vmatprep.mubr.f32.mxu0 0.0
        %1391 = vmatmul.mubr.f32.gmra.mxu0 %v1253
        %v1392 = vpop.f32.mrf.mxu0
        %v1393 = vadd.f32 %v1280, %v1392
        %v1394 = vpop.f32.mrf.mxu0
        %1395 = vmatprep.mubr.f32.mxu0 0.0
        %1396 = vmatmul.mubr.f32.gmra.mxu0 %v1254
        %v1397 = vpop.f32.mrf.mxu0
        %v1398 = vadd.f32 %v1280, %v1397
        %v1399 = vpop.f32.mrf.mxu0
        %1400 = vmatprep.mubr.f32.mxu0 0.0
        %1401 = vmatmul.mubr.f32.gmra.mxu0 %v1255
        %v1402 = vpop.f32.mrf.mxu0
        %v1403 = vadd.f32 %v1280, %v1402
        %v1404 = vpop.f32.mrf.mxu0
        %1405 = vmatprep.mubr.f32.mxu0 0.0
        %1406 = vmatmul.mubr.f32.gmra.mxu0 %v1256
        %v1407 = vpop.f32.mrf.mxu0
        %v1408 = vadd.f32 %v1280, %v1407
        %v1409 = vpop.f32.mrf.mxu0
        %1410 = vmatprep.mubr.f32.mxu0 0.0
        %1411 = vmatmul.mubr.f32.gmra.mxu0 %v1257
        %v1412 = vpop.f32.mrf.mxu0
        %v1413 = vadd.f32 %v1280, %v1412
        %v1414 = vpop.f32.mrf.mxu0
        %1415 = vmatprep.mubr.f32.mxu0 0.0
        %1416 = vmatmul.mubr.f32.gmra.mxu0 %v1258
        %v1417 = vpop.f32.mrf.mxu0
        %v1418 = vadd.f32 %v1280, %v1417
        %v1419 = vpop.f32.mrf.mxu0
        %1420 = vmatprep.mubr.f32.mxu0 0.0
        %1421 = vmatmul.mubr.f32.gmra.mxu0 %v1259
        %v1422 = vpop.f32.mrf.mxu0
        %v1423 = vadd.f32 %v1280, %v1422
        %v1424 = vpop.f32.mrf.mxu0
        %1425 = vdwg.mxu0
        %v1426 = vld [vmem:[%s5 + $0x6] sm:$0x1]
        %v1427 = vld [vmem:[%s5 + $0x7] sm:$0x1]
        %v1428 = vmax.f32 %v1348, 0.0
        %v1429 = vmax.f32 %v1353, 0.0
        %v1430 = vmax.f32 %v1358, 0.0
        %v1431 = vmax.f32 %v1363, 0.0
        %v1432 = vmax.f32 %v1368, 0.0
        %v1433 = vmax.f32 %v1373, 0.0
        %v1434 = vmax.f32 %v1378, 0.0
        %v1435 = vmax.f32 %v1383, 0.0
        %v1436 = vmax.f32 %v1388, 0.0
        %v1437 = vmax.f32 %v1393, 0.0
        %v1438 = vmax.f32 %v1398, 0.0
        %v1439 = vmax.f32 %v1403, 0.0
        %v1440 = vmax.f32 %v1408, 0.0
        %v1441 = vmax.f32 %v1413, 0.0
        %v1442 = vmax.f32 %v1418, 0.0
        %v1443 = vmax.f32 %v1423, 0.0
        %1444 = vadd.xlane.f32.xlu0 %v1428
        %v1445 = vpop.xlane.xlu0 %1444
        %1446 = vadd.xlane.f32.xlu0 %v1429
        %v1447 = vpop.xlane.xlu0 %1446
        %1448 = vadd.xlane.f32.xlu0 %v1430
        %v1449 = vpop.xlane.xlu0 %1448
        %1450 = vadd.xlane.f32.xlu0 %v1431
        %v1451 = vpop.xlane.xlu0 %1450
        %1452 = vadd.xlane.f32.xlu0 %v1432
        %v1453 = vpop.xlane.xlu0 %1452
        %1454 = vadd.xlane.f32.xlu0 %v1433
        %v1455 = vpop.xlane.xlu0 %1454
        %1456 = vadd.xlane.f32.xlu0 %v1434
        %v1457 = vpop.xlane.xlu0 %1456
        %1458 = vadd.xlane.f32.xlu0 %v1435
        %v1459 = vpop.xlane.xlu0 %1458
        %1460 = vadd.xlane.f32.xlu0 %v1436
        %v1461 = vpop.xlane.xlu0 %1460
        %1462 = vadd.xlane.f32.xlu0 %v1437
        %v1463 = vpop.xlane.xlu0 %1462
        %1464 = vadd.xlane.f32.xlu0 %v1438
        %v1465 = vpop.xlane.xlu0 %1464
        %1466 = vadd.xlane.f32.xlu0 %v1439
        %v1467 = vpop.xlane.xlu0 %1466
        %1468 = vadd.xlane.f32.xlu0 %v1440
        %v1469 = vpop.xlane.xlu0 %1468
        %1470 = vadd.xlane.f32.xlu0 %v1441
        %v1471 = vpop.xlane.xlu0 %1470
        %1472 = vadd.xlane.f32.xlu0 %v1442
        %v1473 = vpop.xlane.xlu0 %1472
        %1474 = vadd.xlane.f32.xlu0 %v1443
        %v1475 = vpop.xlane.xlu0 %1474
        %v1476 = vmul.f32 %v1445, %v611
        %v1477 = vmul.f32 %v1447, %v611
        %v1478 = vmul.f32 %v1449, %v611
        %v1479 = vmul.f32 %v1451, %v611
        %v1480 = vmul.f32 %v1453, %v611
        %v1481 = vmul.f32 %v1455, %v611
        %v1482 = vmul.f32 %v1457, %v611
        %v1483 = vmul.f32 %v1459, %v611
        %v1484 = vmul.f32 %v1461, %v611
        %v1485 = vmul.f32 %v1463, %v611
        %v1486 = vmul.f32 %v1465, %v611
        %v1487 = vmul.f32 %v1467, %v611
        %v1488 = vmul.f32 %v1469, %v611
        %v1489 = vmul.f32 %v1471, %v611
        %v1490 = vmul.f32 %v1473, %v611
        %v1491 = vmul.f32 %v1475, %v611
        %v1492 = vmul.f32 %v1428, %v1428
        %v1493 = vmul.f32 %v1429, %v1429
        %v1494 = vmul.f32 %v1430, %v1430
        %v1495 = vmul.f32 %v1431, %v1431
        %v1496 = vmul.f32 %v1432, %v1432
        %v1497 = vmul.f32 %v1433, %v1433
        %v1498 = vmul.f32 %v1434, %v1434
        %v1499 = vmul.f32 %v1435, %v1435
        %v1500 = vmul.f32 %v1436, %v1436
        %v1501 = vmul.f32 %v1437, %v1437
        %v1502 = vmul.f32 %v1438, %v1438
        %v1503 = vmul.f32 %v1439, %v1439
        %v1504 = vmul.f32 %v1440, %v1440
        %v1505 = vmul.f32 %v1441, %v1441
        %v1506 = vmul.f32 %v1442, %v1442
        %v1507 = vmul.f32 %v1443, %v1443
        %1508 = vadd.xlane.f32.xlu0 %v1492
        %v1509 = vpop.xlane.xlu0 %1508
        %1510 = vadd.xlane.f32.xlu0 %v1493
        %v1511 = vpop.xlane.xlu0 %1510
        %1512 = vadd.xlane.f32.xlu0 %v1494
        %v1513 = vpop.xlane.xlu0 %1512
        %1514 = vadd.xlane.f32.xlu0 %v1495
        %v1515 = vpop.xlane.xlu0 %1514
        %1516 = vadd.xlane.f32.xlu0 %v1496
        %v1517 = vpop.xlane.xlu0 %1516
        %1518 = vadd.xlane.f32.xlu0 %v1497
        %v1519 = vpop.xlane.xlu0 %1518
        %1520 = vadd.xlane.f32.xlu0 %v1498
        %v1521 = vpop.xlane.xlu0 %1520
        %1522 = vadd.xlane.f32.xlu0 %v1499
        %v1523 = vpop.xlane.xlu0 %1522
        %1524 = vadd.xlane.f32.xlu0 %v1500
        %v1525 = vpop.xlane.xlu0 %1524
        %1526 = vadd.xlane.f32.xlu0 %v1501
        %v1527 = vpop.xlane.xlu0 %1526
        %1528 = vadd.xlane.f32.xlu0 %v1502
        %v1529 = vpop.xlane.xlu0 %1528
        %1530 = vadd.xlane.f32.xlu0 %v1503
        %v1531 = vpop.xlane.xlu0 %1530
        %1532 = vadd.xlane.f32.xlu0 %v1504
        %v1533 = vpop.xlane.xlu0 %1532
        %1534 = vadd.xlane.f32.xlu0 %v1505
        %v1535 = vpop.xlane.xlu0 %1534
        %1536 = vadd.xlane.f32.xlu0 %v1506
        %v1537 = vpop.xlane.xlu0 %1536
        %1538 = vadd.xlane.f32.xlu0 %v1507
        %v1539 = vpop.xlane.xlu0 %1538
        %v1540 = vmul.f32 %v1509, %v611
        %v1541 = vmul.f32 %v1511, %v611
        %v1542 = vmul.f32 %v1513, %v611
        %v1543 = vmul.f32 %v1515, %v611
        %v1544 = vmul.f32 %v1517, %v611
        %v1545 = vmul.f32 %v1519, %v611
        %v1546 = vmul.f32 %v1521, %v611
        %v1547 = vmul.f32 %v1523, %v611
        %v1548 = vmul.f32 %v1525, %v611
        %v1549 = vmul.f32 %v1527, %v611
        %v1550 = vmul.f32 %v1529, %v611
        %v1551 = vmul.f32 %v1531, %v611
        %v1552 = vmul.f32 %v1533, %v611
        %v1553 = vmul.f32 %v1535, %v611
        %v1554 = vmul.f32 %v1537, %v611
        %v1555 = vmul.f32 %v1539, %v611
        %v1556 = vmul.f32 %v1476, %v1476
        %v1557 = vmul.f32 %v1477, %v1477
        %v1558 = vmul.f32 %v1478, %v1478
        %v1559 = vmul.f32 %v1479, %v1479
        %v1560 = vmul.f32 %v1480, %v1480
        %v1561 = vmul.f32 %v1481, %v1481
        %v1562 = vmul.f32 %v1482, %v1482
        %v1563 = vmul.f32 %v1483, %v1483
        %v1564 = vmul.f32 %v1484, %v1484
        %v1565 = vmul.f32 %v1485, %v1485
        %v1566 = vmul.f32 %v1486, %v1486
        %v1567 = vmul.f32 %v1487, %v1487
        %v1568 = vmul.f32 %v1488, %v1488
        %v1569 = vmul.f32 %v1489, %v1489
        %v1570 = vmul.f32 %v1490, %v1490
        %v1571 = vmul.f32 %v1491, %v1491
        %v1572 = vsub.f32 %v1540, %v1556
        %v1573 = vsub.f32 %v1541, %v1557
        %v1574 = vsub.f32 %v1542, %v1558
        %v1575 = vsub.f32 %v1543, %v1559
        %v1576 = vsub.f32 %v1544, %v1560
        %v1577 = vsub.f32 %v1545, %v1561
        %v1578 = vsub.f32 %v1546, %v1562
        %v1579 = vsub.f32 %v1547, %v1563
        %v1580 = vsub.f32 %v1548, %v1564
        %v1581 = vsub.f32 %v1549, %v1565
        %v1582 = vsub.f32 %v1550, %v1566
        %v1583 = vsub.f32 %v1551, %v1567
        %v1584 = vsub.f32 %v1552, %v1568
        %v1585 = vsub.f32 %v1553, %v1569
        %v1586 = vsub.f32 %v1554, %v1570
        %v1587 = vsub.f32 %v1555, %v1571
        %v1588 = vadd.f32 %v1572, 1e-05
        %v1589 = vadd.f32 %v1573, 1e-05
        %v1590 = vadd.f32 %v1574, 1e-05
        %v1591 = vadd.f32 %v1575, 1e-05
        %v1592 = vadd.f32 %v1576, 1e-05
        %v1593 = vadd.f32 %v1577, 1e-05
        %v1594 = vadd.f32 %v1578, 1e-05
        %v1595 = vadd.f32 %v1579, 1e-05
        %v1596 = vadd.f32 %v1580, 1e-05
        %v1597 = vadd.f32 %v1581, 1e-05
        %v1598 = vadd.f32 %v1582, 1e-05
        %v1599 = vadd.f32 %v1583, 1e-05
        %v1600 = vadd.f32 %v1584, 1e-05
        %v1601 = vadd.f32 %v1585, 1e-05
        %v1602 = vadd.f32 %v1586, 1e-05
        %v1603 = vadd.f32 %v1587, 1e-05
        %v1604 = vrsqrt.pop %v1588
        %v1605 = vrsqrt.pop %v1589
        %v1606 = vrsqrt.pop %v1590
        %v1607 = vrsqrt.pop %v1591
        %v1608 = vrsqrt.pop %v1592
        %v1609 = vrsqrt.pop %v1593
        %v1610 = vrsqrt.pop %v1594
        %v1611 = vrsqrt.pop %v1595
        %v1612 = vrsqrt.pop %v1596
        %v1613 = vrsqrt.pop %v1597
        %v1614 = vrsqrt.pop %v1598
        %v1615 = vrsqrt.pop %v1599
        %v1616 = vrsqrt.pop %v1600
        %v1617 = vrsqrt.pop %v1601
        %v1618 = vrsqrt.pop %v1602
        %v1619 = vrsqrt.pop %v1603
        %v1620 = vlaneseq
        %v1621 = vshrl.u32 %v1620, 7
        %v1622 = vsub.s32 0, %v1621
        %v1623 = vrot.slane %v1426, %v1622
        %v1624 = vmul.f32 %v1623, %v1604
        %v1625 = vmul.f32 %v1623, %v1605
        %v1626 = vmul.f32 %v1623, %v1606
        %v1627 = vmul.f32 %v1623, %v1607
        %v1628 = vmul.f32 %v1623, %v1608
        %v1629 = vmul.f32 %v1623, %v1609
        %v1630 = vmul.f32 %v1623, %v1610
        %v1631 = vmul.f32 %v1623, %v1611
        %v1632 = vmul.f32 %v1623, %v1612
        %v1633 = vmul.f32 %v1623, %v1613
        %v1634 = vmul.f32 %v1623, %v1614
        %v1635 = vmul.f32 %v1623, %v1615
        %v1636 = vmul.f32 %v1623, %v1616
        %v1637 = vmul.f32 %v1623, %v1617
        %v1638 = vmul.f32 %v1623, %v1618
        %v1639 = vmul.f32 %v1623, %v1619
        %v1640 = vsub.f32 %v1428, %v1476
        %v1641 = vsub.f32 %v1429, %v1477
        %v1642 = vsub.f32 %v1430, %v1478
        %v1643 = vsub.f32 %v1431, %v1479
        %v1644 = vsub.f32 %v1432, %v1480
        %v1645 = vsub.f32 %v1433, %v1481
        %v1646 = vsub.f32 %v1434, %v1482
        %v1647 = vsub.f32 %v1435, %v1483
        %v1648 = vsub.f32 %v1436, %v1484
        %v1649 = vsub.f32 %v1437, %v1485
        %v1650 = vsub.f32 %v1438, %v1486
        %v1651 = vsub.f32 %v1439, %v1487
        %v1652 = vsub.f32 %v1440, %v1488
        %v1653 = vsub.f32 %v1441, %v1489
        %v1654 = vsub.f32 %v1442, %v1490
        %v1655 = vsub.f32 %v1443, %v1491
        %v1656 = vmul.f32 %v1640, %v1624
        %v1657 = vmul.f32 %v1641, %v1625
        %v1658 = vmul.f32 %v1642, %v1626
        %v1659 = vmul.f32 %v1643, %v1627
        %v1660 = vmul.f32 %v1644, %v1628
        %v1661 = vmul.f32 %v1645, %v1629
        %v1662 = vmul.f32 %v1646, %v1630
        %v1663 = vmul.f32 %v1647, %v1631
        %v1664 = vmul.f32 %v1648, %v1632
        %v1665 = vmul.f32 %v1649, %v1633
        %v1666 = vmul.f32 %v1650, %v1634
        %v1667 = vmul.f32 %v1651, %v1635
        %v1668 = vmul.f32 %v1652, %v1636
        %v1669 = vmul.f32 %v1653, %v1637
        %v1670 = vmul.f32 %v1654, %v1638
        %v1671 = vmul.f32 %v1655, %v1639
        %v1672 = vlaneseq
        %v1673 = vshrl.u32 %v1672, 7
        %v1674 = vsub.s32 0, %v1673
        %v1675 = vrot.slane %v1427, %v1674
        %v1676 = vadd.f32 %v1656, %v1675
        %v1677 = vadd.f32 %v1657, %v1675
        %v1678 = vadd.f32 %v1658, %v1675
        %v1679 = vadd.f32 %v1659, %v1675
        %v1680 = vadd.f32 %v1660, %v1675
        %v1681 = vadd.f32 %v1661, %v1675
        %v1682 = vadd.f32 %v1662, %v1675
        %v1683 = vadd.f32 %v1663, %v1675
        %v1684 = vadd.f32 %v1664, %v1675
        %v1685 = vadd.f32 %v1665, %v1675
        %v1686 = vadd.f32 %v1666, %v1675
        %v1687 = vadd.f32 %v1667, %v1675
        %v1688 = vadd.f32 %v1668, %v1675
        %v1689 = vadd.f32 %v1669, %v1675
        %v1690 = vadd.f32 %v1670, %v1675
        %v1691 = vadd.f32 %v1671, %v1675
        %v1692 = vld [vmem:[%s6] sm:$0xff]
        %v1693 = vld [vmem:[%s6 + $0x8] sm:$0xff]
        %v1694 = vld [vmem:[%s6 + $0x10] sm:$0xff]
        %v1695 = vld [vmem:[%s6 + $0x18] sm:$0xff]
        %v1696 = vld [vmem:[%s6 + $0x20] sm:$0xff]
        %v1697 = vld [vmem:[%s6 + $0x28] sm:$0xff]
        %v1698 = vld [vmem:[%s6 + $0x30] sm:$0xff]
        %v1699 = vld [vmem:[%s6 + $0x38] sm:$0xff]
        %v1700 = vld [vmem:[%s6 + $0x40] sm:$0xff]
        %v1701 = vld [vmem:[%s6 + $0x48] sm:$0xff]
        %v1702 = vld [vmem:[%s6 + $0x50] sm:$0xff]
        %v1703 = vld [vmem:[%s6 + $0x58] sm:$0xff]
        %v1704 = vld [vmem:[%s6 + $0x60] sm:$0xff]
        %v1705 = vld [vmem:[%s6 + $0x68] sm:$0xff]
        %v1706 = vld [vmem:[%s6 + $0x70] sm:$0xff]
        %v1707 = vld [vmem:[%s6 + $0x78] sm:$0xff]
        %v1708 = vld [vmem:[%s6 + $0x80] sm:$0xff]
        %v1709 = vld [vmem:[%s6 + $0x88] sm:$0xff]
        %v1710 = vld [vmem:[%s6 + $0x90] sm:$0xff]
        %v1711 = vld [vmem:[%s6 + $0x98] sm:$0xff]
        %v1712 = vld [vmem:[%s6 + $0xa0] sm:$0xff]
        %v1713 = vld [vmem:[%s6 + $0xa8] sm:$0xff]
        %v1714 = vld [vmem:[%s6 + $0xb0] sm:$0xff]
        %v1715 = vld [vmem:[%s6 + $0xb8] sm:$0xff]
        %v1716 = vld [vmem:[%s6 + $0xc0] sm:$0xff]
        %v1717 = vld [vmem:[%s6 + $0xc8] sm:$0xff]
        %v1718 = vld [vmem:[%s6 + $0xd0] sm:$0xff]
        %v1719 = vld [vmem:[%s6 + $0xd8] sm:$0xff]
        %v1720 = vld [vmem:[%s6 + $0xe0] sm:$0xff]
        %v1721 = vld [vmem:[%s6 + $0xe8] sm:$0xff]
        %v1722 = vld [vmem:[%s6 + $0xf0] sm:$0xff]
        %v1723 = vld [vmem:[%s6 + $0xf8] sm:$0xff]
        %v1724 = vld [vmem:[%s7] sm:$0x3]
        %v1726 = vlaneseq
        %v1727 = vshrl.u32 %v1726, 7
        %v1728 = vsub.s32 0, %v1727
        %v1729 = vrot.slane %v1724, %v1728
        %v1730 = vlaneseq
        %v1731 = vshrl.u32 %v1730, 7
        %v1732 = vsub.s32 1, %v1731
        %v1733 = vrot.slane %v1724, %v1732
        %1736 = vmatprep.subr.mxu0 %v1723
        %1737 = vmatpush1.msra.mxu0 %v1722
        %1738 = vmatprep.subr.mxu0 %v1721
        %1739 = vmatpush1.msra.mxu0 %v1720
        %1740 = vmatprep.subr.mxu0 %v1719
        %1741 = vmatpush1.msra.mxu0 %v1718
        %1742 = vmatprep.subr.mxu0 %v1717
        %1743 = vmatpush1.msra.mxu0 %v1716
        %1744 = vmatprep.subr.mxu0 %v1715
        %1745 = vmatpush1.msra.mxu0 %v1714
        %1746 = vmatprep.subr.mxu0 %v1713
        %1747 = vmatpush1.msra.mxu0 %v1712
        %1748 = vmatprep.subr.mxu0 %v1711
        %1749 = vmatpush1.msra.mxu0 %v1710
        %1750 = vmatprep.subr.mxu0 %v1709
        %1751 = vmatpush1.msra.mxu0 %v1708
        %1752 = vmatprep.subr.mxu0 %v1707
        %1753 = vmatpush1.msra.mxu0 %v1706
        %1754 = vmatprep.subr.mxu0 %v1705
        %1755 = vmatpush1.msra.mxu0 %v1704
        %1756 = vmatprep.subr.mxu0 %v1703
        %1757 = vmatpush1.msra.mxu0 %v1702
        %1758 = vmatprep.subr.mxu0 %v1701
        %1759 = vmatpush1.msra.mxu0 %v1700
        %1760 = vmatprep.subr.mxu0 %v1699
        %1761 = vmatpush1.msra.mxu0 %v1698
        %1762 = vmatprep.subr.mxu0 %v1697
        %1763 = vmatpush1.msra.mxu0 %v1696
        %1764 = vmatprep.subr.mxu0 %v1695
        %1765 = vmatpush1.msra.mxu0 %v1694
        %1766 = vmatprep.subr.mxu0 %v1693
        %1767 = vmatpush1.msra.mxu0 %v1692
        %1768 = vmatprep.subr.mxu0 0.0
        %1769 = vmatpush2.msra.mxu0 0.0
        %1770 = vmatprep.subr.mxu0 0.0
        %1771 = vmatpush2.msra.mxu0 0.0
        %1772 = vmatprep.subr.mxu0 0.0
        %1773 = vmatpush2.msra.mxu0 0.0
        %1774 = vmatprep.subr.mxu0 0.0
        %1775 = vmatpush2.msra.mxu0 0.0
        %1776 = vmatprep.subr.mxu0 0.0
        %1777 = vmatpush2.msra.mxu0 0.0
        %1778 = vmatprep.subr.mxu0 0.0
        %1779 = vmatpush2.msra.mxu0 0.0
        %1780 = vmatprep.subr.mxu0 0.0
        %1781 = vmatpush2.msra.mxu0 0.0
        %1782 = vmatprep.subr.mxu0 0.0
        %1783 = vmatpush2.msra.mxu0 0.0
        %1784 = vmatprep.subr.mxu0 0.0
        %1785 = vmatpush2.msra.mxu0 0.0
        %1786 = vmatprep.subr.mxu0 0.0
        %1787 = vmatpush2.msra.mxu0 0.0
        %1788 = vmatprep.subr.mxu0 0.0
        %1789 = vmatpush2.msra.mxu0 0.0
        %1790 = vmatprep.subr.mxu0 0.0
        %1791 = vmatpush2.msra.mxu0 0.0
        %1792 = vmatprep.subr.mxu0 0.0
        %1793 = vmatpush2.msra.mxu0 0.0
        %1794 = vmatprep.subr.mxu0 0.0
        %1795 = vmatpush2.msra.mxu0 0.0
        %1796 = vmatprep.subr.mxu0 0.0
        %1797 = vmatpush2.msra.mxu0 0.0
        %1798 = vmatprep.subr.mxu0 0.0
        %1799 = vmatpush2.msra.mxu0 0.0
        %1800 = vmatprep.mubr.f32.mxu0 0.0
        %1801 = vmatmul.mubr.f32.gmra.mxu0 %v1676
        %v1802 = vpop.f32.mrf.mxu0
        %v1803 = vadd.f32 %v1729, %v1802
        %v1804 = vpop.f32.mrf.mxu0
        %v1805 = vadd.f32 %v1733, %v1804
        %1806 = vmatprep.mubr.f32.mxu0 0.0
        %1807 = vmatmul.mubr.f32.gmra.mxu0 %v1677
        %v1808 = vpop.f32.mrf.mxu0
        %v1809 = vadd.f32 %v1729, %v1808
        %v1810 = vpop.f32.mrf.mxu0
        %v1811 = vadd.f32 %v1733, %v1810
        %1812 = vmatprep.mubr.f32.mxu0 0.0
        %1813 = vmatmul.mubr.f32.gmra.mxu0 %v1678
        %v1814 = vpop.f32.mrf.mxu0
        %v1815 = vadd.f32 %v1729, %v1814
        %v1816 = vpop.f32.mrf.mxu0
        %v1817 = vadd.f32 %v1733, %v1816
        %1818 = vmatprep.mubr.f32.mxu0 0.0
        %1819 = vmatmul.mubr.f32.gmra.mxu0 %v1679
        %v1820 = vpop.f32.mrf.mxu0
        %v1821 = vadd.f32 %v1729, %v1820
        %v1822 = vpop.f32.mrf.mxu0
        %v1823 = vadd.f32 %v1733, %v1822
        %1824 = vmatprep.mubr.f32.mxu0 0.0
        %1825 = vmatmul.mubr.f32.gmra.mxu0 %v1680
        %v1826 = vpop.f32.mrf.mxu0
        %v1827 = vadd.f32 %v1729, %v1826
        %v1828 = vpop.f32.mrf.mxu0
        %v1829 = vadd.f32 %v1733, %v1828
        %1830 = vmatprep.mubr.f32.mxu0 0.0
        %1831 = vmatmul.mubr.f32.gmra.mxu0 %v1681
        %v1832 = vpop.f32.mrf.mxu0
        %v1833 = vadd.f32 %v1729, %v1832
        %v1834 = vpop.f32.mrf.mxu0
        %v1835 = vadd.f32 %v1733, %v1834
        %1836 = vmatprep.mubr.f32.mxu0 0.0
        %1837 = vmatmul.mubr.f32.gmra.mxu0 %v1682
        %v1838 = vpop.f32.mrf.mxu0
        %v1839 = vadd.f32 %v1729, %v1838
        %v1840 = vpop.f32.mrf.mxu0
        %v1841 = vadd.f32 %v1733, %v1840
        %1842 = vmatprep.mubr.f32.mxu0 0.0
        %1843 = vmatmul.mubr.f32.gmra.mxu0 %v1683
        %v1844 = vpop.f32.mrf.mxu0
        %v1845 = vadd.f32 %v1729, %v1844
        %v1846 = vpop.f32.mrf.mxu0
        %v1847 = vadd.f32 %v1733, %v1846
        %1848 = vmatprep.mubr.f32.mxu0 0.0
        %1849 = vmatmul.mubr.f32.gmra.mxu0 %v1684
        %v1850 = vpop.f32.mrf.mxu0
        %v1851 = vadd.f32 %v1729, %v1850
        %v1852 = vpop.f32.mrf.mxu0
        %v1853 = vadd.f32 %v1733, %v1852
        %1854 = vmatprep.mubr.f32.mxu0 0.0
        %1855 = vmatmul.mubr.f32.gmra.mxu0 %v1685
        %v1856 = vpop.f32.mrf.mxu0
        %v1857 = vadd.f32 %v1729, %v1856
        %v1858 = vpop.f32.mrf.mxu0
        %v1859 = vadd.f32 %v1733, %v1858
        %1860 = vmatprep.mubr.f32.mxu0 0.0
        %1861 = vmatmul.mubr.f32.gmra.mxu0 %v1686
        %v1862 = vpop.f32.mrf.mxu0
        %v1863 = vadd.f32 %v1729, %v1862
        %v1864 = vpop.f32.mrf.mxu0
        %v1865 = vadd.f32 %v1733, %v1864
        %1866 = vmatprep.mubr.f32.mxu0 0.0
        %1867 = vmatmul.mubr.f32.gmra.mxu0 %v1687
        %v1868 = vpop.f32.mrf.mxu0
        %v1869 = vadd.f32 %v1729, %v1868
        %v1870 = vpop.f32.mrf.mxu0
        %v1871 = vadd.f32 %v1733, %v1870
        %1872 = vmatprep.mubr.f32.mxu0 0.0
        %1873 = vmatmul.mubr.f32.gmra.mxu0 %v1688
        %v1874 = vpop.f32.mrf.mxu0
        %v1875 = vadd.f32 %v1729, %v1874
        %v1876 = vpop.f32.mrf.mxu0
        %v1877 = vadd.f32 %v1733, %v1876
        %1878 = vmatprep.mubr.f32.mxu0 0.0
        %1879 = vmatmul.mubr.f32.gmra.mxu0 %v1689
        %v1880 = vpop.f32.mrf.mxu0
        %v1881 = vadd.f32 %v1729, %v1880
        %v1882 = vpop.f32.mrf.mxu0
        %v1883 = vadd.f32 %v1733, %v1882
        %1884 = vmatprep.mubr.f32.mxu0 0.0
        %1885 = vmatmul.mubr.f32.gmra.mxu0 %v1690
        %v1886 = vpop.f32.mrf.mxu0
        %v1887 = vadd.f32 %v1729, %v1886
        %v1888 = vpop.f32.mrf.mxu0
        %v1889 = vadd.f32 %v1733, %v1888
        %1890 = vmatprep.mubr.f32.mxu0 0.0
        %1891 = vmatmul.mubr.f32.gmra.mxu0 %v1691
        %v1892 = vpop.f32.mrf.mxu0
        %v1893 = vadd.f32 %v1729, %v1892
        %v1894 = vpop.f32.mrf.mxu0
        %v1895 = vadd.f32 %v1733, %v1894
        %1896 = vdwg.mxu0
        %v1897 = vxor.u32 %v1803, 2147483648
        %v1898 = vxor.u32 %v1809, 2147483648
        %v1899 = vxor.u32 %v1815, 2147483648
        %v1900 = vxor.u32 %v1821, 2147483648
        %v1901 = vxor.u32 %v1827, 2147483648
        %v1902 = vxor.u32 %v1833, 2147483648
        %v1903 = vxor.u32 %v1839, 2147483648
        %v1904 = vxor.u32 %v1845, 2147483648
        %v1905 = vxor.u32 %v1851, 2147483648
        %v1906 = vxor.u32 %v1857, 2147483648
        %v1907 = vxor.u32 %v1863, 2147483648
        %v1908 = vxor.u32 %v1869, 2147483648
        %v1909 = vxor.u32 %v1875, 2147483648
        %v1910 = vxor.u32 %v1881, 2147483648
        %v1911 = vxor.u32 %v1887, 2147483648
        %v1912 = vxor.u32 %v1893, 2147483648
        %v1913 = vmul.f32 %v1897, 1.442695
        %v1914 = vpow.pop %v1913
        %v1915 = vmul.f32 %v1898, 1.442695
        %v1916 = vpow.pop %v1915
        %v1917 = vmul.f32 %v1899, 1.442695
        %v1918 = vpow.pop %v1917
        %v1919 = vmul.f32 %v1900, 1.442695
        %v1920 = vpow.pop %v1919
        %v1921 = vmul.f32 %v1901, 1.442695
        %v1922 = vpow.pop %v1921
        %v1923 = vmul.f32 %v1902, 1.442695
        %v1924 = vpow.pop %v1923
        %v1925 = vmul.f32 %v1903, 1.442695
        %v1926 = vpow.pop %v1925
        %v1927 = vmul.f32 %v1904, 1.442695
        %v1928 = vpow.pop %v1927
        %v1929 = vmul.f32 %v1905, 1.442695
        %v1930 = vpow.pop %v1929
        %v1931 = vmul.f32 %v1906, 1.442695
        %v1932 = vpow.pop %v1931
        %v1933 = vmul.f32 %v1907, 1.442695
        %v1934 = vpow.pop %v1933
        %v1935 = vmul.f32 %v1908, 1.442695
        %v1936 = vpow.pop %v1935
        %v1937 = vmul.f32 %v1909, 1.442695
        %v1938 = vpow.pop %v1937
        %v1939 = vmul.f32 %v1910, 1.442695
        %v1940 = vpow.pop %v1939
        %v1941 = vmul.f32 %v1911, 1.442695
        %v1942 = vpow.pop %v1941
        %v1943 = vmul.f32 %v1912, 1.442695
        %v1944 = vpow.pop %v1943
        %v1945 = vadd.f32 %v1914, 1.0
        %v1946 = vadd.f32 %v1916, 1.0
        %v1947 = vadd.f32 %v1918, 1.0
        %v1948 = vadd.f32 %v1920, 1.0
        %v1949 = vadd.f32 %v1922, 1.0
        %v1950 = vadd.f32 %v1924, 1.0
        %v1951 = vadd.f32 %v1926, 1.0
        %v1952 = vadd.f32 %v1928, 1.0
        %v1953 = vadd.f32 %v1930, 1.0
        %v1954 = vadd.f32 %v1932, 1.0
        %v1955 = vadd.f32 %v1934, 1.0
        %v1956 = vadd.f32 %v1936, 1.0
        %v1957 = vadd.f32 %v1938, 1.0
        %v1958 = vadd.f32 %v1940, 1.0
        %v1959 = vadd.f32 %v1942, 1.0
        %v1960 = vadd.f32 %v1944, 1.0
        %v1961 = vrcp.pop %v1945
        %v1962 = vmul.f32 1.0, %v1961
        %v1963 = vrcp.pop %v1946
        %v1964 = vmul.f32 1.0, %v1963
        %v1965 = vrcp.pop %v1947
        %v1966 = vmul.f32 1.0, %v1965
        %v1967 = vrcp.pop %v1948
        %v1968 = vmul.f32 1.0, %v1967
        %v1969 = vrcp.pop %v1949
        %v1970 = vmul.f32 1.0, %v1969
        %v1971 = vrcp.pop %v1950
        %v1972 = vmul.f32 1.0, %v1971
        %v1973 = vrcp.pop %v1951
        %v1974 = vmul.f32 1.0, %v1973
        %v1975 = vrcp.pop %v1952
        %v1976 = vmul.f32 1.0, %v1975
        %v1977 = vrcp.pop %v1953
        %v1978 = vmul.f32 1.0, %v1977
        %v1979 = vrcp.pop %v1954
        %v1980 = vmul.f32 1.0, %v1979
        %v1981 = vrcp.pop %v1955
        %v1982 = vmul.f32 1.0, %v1981
        %v1983 = vrcp.pop %v1956
        %v1984 = vmul.f32 1.0, %v1983
        %v1985 = vrcp.pop %v1957
        %v1986 = vmul.f32 1.0, %v1985
        %v1987 = vrcp.pop %v1958
        %v1988 = vmul.f32 1.0, %v1987
        %v1989 = vrcp.pop %v1959
        %v1990 = vmul.f32 1.0, %v1989
        %v1991 = vrcp.pop %v1960
        %v1992 = vmul.f32 1.0, %v1991
        %v1993 = vmul.f32 %v1962, %v1805
        %v1994 = vmul.f32 %v1964, %v1811
        %v1995 = vmul.f32 %v1966, %v1817
        %v1996 = vmul.f32 %v1968, %v1823
        %v1997 = vmul.f32 %v1970, %v1829
        %v1998 = vmul.f32 %v1972, %v1835
        %v1999 = vmul.f32 %v1974, %v1841
        %v2000 = vmul.f32 %v1976, %v1847
        %v2001 = vmul.f32 %v1978, %v1853
        %v2002 = vmul.f32 %v1980, %v1859
        %v2003 = vmul.f32 %v1982, %v1865
        %v2004 = vmul.f32 %v1984, %v1871
        %v2005 = vmul.f32 %v1986, %v1877
        %v2006 = vmul.f32 %v1988, %v1883
        %v2007 = vmul.f32 %v1990, %v1889
        %v2008 = vmul.f32 %v1992, %v1895
        %v2009 = vadd.f32 %v469, %v1993
        %v2010 = vadd.f32 %v475, %v1994
        %v2011 = vadd.f32 %v481, %v1995
        %v2012 = vadd.f32 %v487, %v1996
        %v2013 = vadd.f32 %v493, %v1997
        %v2014 = vadd.f32 %v499, %v1998
        %v2015 = vadd.f32 %v505, %v1999
        %v2016 = vadd.f32 %v511, %v2000
        %v2017 = vadd.f32 %v517, %v2001
        %v2018 = vadd.f32 %v523, %v2002
        %v2019 = vadd.f32 %v529, %v2003
        %v2020 = vadd.f32 %v535, %v2004
        %v2021 = vadd.f32 %v541, %v2005
        %v2022 = vadd.f32 %v547, %v2006
        %v2023 = vadd.f32 %v553, %v2007
        %v2024 = vadd.f32 %v559, %v2008
        %2025 = vst [vmem:[%s299] sm:$0xff] %v2009
        %2026 = vst [vmem:[%s299 + $0x8] sm:$0xff] %v2010
        %2027 = vst [vmem:[%s299 + $0x10] sm:$0xff] %v2011
        %2028 = vst [vmem:[%s299 + $0x18] sm:$0xff] %v2012
        %2029 = vst [vmem:[%s299 + $0x20] sm:$0xff] %v2013
        %2030 = vst [vmem:[%s299 + $0x28] sm:$0xff] %v2014
        %2031 = vst [vmem:[%s299 + $0x30] sm:$0xff] %v2015
        %2032 = vst [vmem:[%s299 + $0x38] sm:$0xff] %v2016
        %2033 = vst [vmem:[%s299 + $0x40] sm:$0xff] %v2017
        %2034 = vst [vmem:[%s299 + $0x48] sm:$0xff] %v2018
        %2035 = vst [vmem:[%s299 + $0x50] sm:$0xff] %v2019
        %2036 = vst [vmem:[%s299 + $0x58] sm:$0xff] %v2020
        %2037 = vst [vmem:[%s299 + $0x60] sm:$0xff] %v2021
        %2038 = vst [vmem:[%s299 + $0x68] sm:$0xff] %v2022
        %2039 = vst [vmem:[%s299 + $0x70] sm:$0xff] %v2023
        %2040 = vst [vmem:[%s299 + $0x78] sm:$0xff] %v2024
        %s2041 = sand.u32 %s203, 1
        %s2042 = scalar_lea.sflag [#allocation3], %s2041
        %s2043 = sand.u32 %s203, 1
        %s2044 = smul.addr %s2043, 128
        %s2045 = scalar_lea.vmem [#allocation2], %s2044
        // Predicated region
        $region53: #{tpu_custom_call.1} parent=51 // pred_check
          %p2046 = pneg %p213
        $region54: #{tpu_custom_call.1} parent=51 // pred_check_branch
          %2048 = sbr.rel (%p2046) target = $region56
        $region55: #{tpu_custom_call.1} parent=51 // pred_region
          %s2049 = smul.u32 16, %s22
          %s2051 = ssub.s32 2048, 2048
          %2052 = vsyncadd %s2042, %s2051
          %s2053 = smul.addr %s2049, 128
          %s2054 = scalar_lea.hbm %s8, %s2053
          %s2055 = sshll.u32 %s2045, 4
          %s2056 = int_to_ptr.vmem [resolvable:$true] %s2055
          %2061 = dma.vmem_to_hbm [thread:$0]  %s2056, 2048, %s2054, %s2042, 128, 128, 8
        $region56: #{tpu_custom_call.1} parent=51 // pred_fallthru
          _
      $region52: #{tpu_custom_call.1} parent=5 // pred_fallthru
        _
      %p2062 = scmp.le.s32.totalorder 2, %s17
      // Predicated region
      $region57: #{tpu_custom_call.1} parent=5 // pred_check
        %p2063 = pneg %p2062
      $region58: #{tpu_custom_call.1} parent=5 // pred_check_branch
        %2065 = sbr.rel (%p2063) target = $region60
      $region59: #{tpu_custom_call.1} parent=5 // pred_region
        %s2066 = ssub.s32 %s17, 2
        // Predicated region
        $region61: #{tpu_custom_call.1} parent=59 // pred_check
          %p2067 = pneg %p219
        $region62: #{tpu_custom_call.1} parent=59 // pred_check_branch
          %2069 = sbr.rel (%p2067) target = $region64
        $region63: #{tpu_custom_call.1} parent=59 // pred_region
          %s2070 = sand.u32 %s204, 1
          %s2071 = scalar_lea.sflag [#allocation3], %s2070
          %s2072 = sand.u32 %s204, 1
          %s2073 = smul.addr %s2072, 128
          %s2074 = scalar_lea.vmem [#allocation2], %s2073
          %2075 = dma.done %s2071, 2048
        $region64: #{tpu_custom_call.1} parent=59 // pred_fallthru
          _
      $region60: #{tpu_custom_call.1} parent=5 // pred_fallthru
        _
    $region6: #{tpu_custom_call.1} parent=1 // loop_footer
      %s21 = sadd.s32 1, %s17
    $region7: #{tpu_custom_call.1} parent=1 // loop_footer_branch
      %16 = sbr.rel target = $region3
    $region8: #{tpu_custom_call.1} parent=1 // loop_exit
      _
    %2076 = vsyncpa [#allocation3], 1
    %s2077 = scalar_lea.sflag [#allocation3], 1
    %2078 = vsyncpa %s2077, 1

</llo_original>
